<compile_context>
chip_gen: v5e
topology: v5e:2x2
jax: 0.10.0
libtpu: 0.0.40
codegen_flags: <defaults>
</compile_context>

<pallas_src>
from functools import partial

import numpy as np
import jax
import jax.numpy as jnp
from jax import lax
from jax.experimental import pallas as pl
from jax.experimental.pallas import tpu as pltpu


_DEFAULT_VMEM_LIMIT = 48 * 1024 * 1024  # safe on v5e/v6e (128 MiB) and v7x (64 MiB)


# ---------------------------------------------------------------------------
# Kernel 1: flattened input projection  xp = x(T*B, E) @ W_ih(E, 4H) + bias
# One large, row-tiled, pipelined GEMM -- no sequential dependence, so it is
# removed from the recurrence's critical path.  bf16 operands, f32 accumulate,
# bf16 output.
# ---------------------------------------------------------------------------
def input_proj_kernel(x_ref, w_ref, b_ref, xp_ref):
    # x_ref: (rt, E) bf16   w_ref: (E, 4H) bf16   b_ref: (1, 4H) f32
    # xp_ref: (rt, 4H) bf16
    acc = jnp.dot(x_ref[...], w_ref[...], preferred_element_type=jnp.float32)
    xp_ref[...] = (acc + b_ref[...]).astype(xp_ref.dtype)


def run_input_projection(x_flat, w_ih, bias, *, out_dtype=jnp.bfloat16,
                         row_tile=256, vmem_limit_bytes=_DEFAULT_VMEM_LIMIT):
    R, E = x_flat.shape
    G = w_ih.shape[-1]                       # 4*H (lane-dense)
    rt = min(row_tile, R)
    r_pad = ((R + rt - 1) // rt) * rt
    if r_pad != R:
        x_flat = jnp.pad(x_flat, ((0, r_pad - R), (0, 0)))
    xp = pl.pallas_call(
        input_proj_kernel,
        out_shape=jax.ShapeDtypeStruct((r_pad, G), out_dtype),
        grid=(r_pad // rt,),
        in_specs=[pl.BlockSpec((rt, E), lambda r: (r, 0)),
                  pl.BlockSpec((E, G), lambda r: (0, 0)),
                  pl.BlockSpec((1, G), lambda r: (0, 0))],
        out_specs=pl.BlockSpec((rt, G), lambda r: (r, 0)),
        compiler_params=pltpu.CompilerParams(
            dimension_semantics=("parallel",),
            vmem_limit_bytes=vmem_limit_bytes),
    )(x_flat, w_ih, bias)
    return xp[:R]


# ---------------------------------------------------------------------------
# Kernel 2: LSTM recurrence, Tt timesteps per grid step, fused masked
# max-over-time.
#
#   len_ref : (block_b, 1) int32      sequence lengths
#   xp_ref  : (Tt, block_b, 4H) bf16  pre-projected gates (incl. bias)
#   whh_ref : (H, 4H) bf16            fused hidden->gate weights (i|f|g|o)
#   out_ref : (Tt, block_b, H) f32    LSTM outputs, -inf at padded positions
#   h_ref, c_ref, sent_ref : (block_b, H) f32  grid-resident running state
#
# h/c/sent are output blocks whose index does not change along the T axis, so
# Pallas keeps them resident in VMEM across the whole recurrence.
# ---------------------------------------------------------------------------
def lstm_recurrence_kernel(len_ref, xp_ref, whh_ref,
                           out_ref, h_ref, c_ref, sent_ref, *, Tt, H):
    ti = pl.program_id(1)

    @pl.when(ti == 0)
    def _init():
        h_ref[...] = jnp.zeros(h_ref.shape, h_ref.dtype)
        c_ref[...] = jnp.zeros(c_ref.shape, c_ref.dtype)
        sent_ref[...] = jnp.full(sent_ref.shape, -jnp.inf, sent_ref.dtype)

    lengths = len_ref[...]                         # (block_b, 1) int32
    whh = whh_ref[...]                             # (H, 4H) bf16

    def step(tt, carry):
        h, c, sent = carry
        t = ti * Tt + tt                           # global timestep
        xp_t = xp_ref[tt].astype(jnp.float32)      # (block_b, 4H)

        # Single fused (B,H)x(H,4H) MXU op per step; bf16 operands, f32 acc.
        gates = xp_t + jnp.dot(h.astype(jnp.bfloat16), whh,
                               preferred_element_type=jnp.float32)
        i_g = jax.nn.sigmoid(gates[:, 0 * H:1 * H])
        f_g = jax.nn.sigmoid(gates[:, 1 * H:2 * H])
        g_g = jnp.tanh(gates[:, 2 * H:3 * H])
        o_g = jax.nn.sigmoid(gates[:, 3 * H:4 * H])

        c_new = f_g * c + i_g * g_g
        h_new = o_g * jnp.tanh(c_new)

        # Validity mask built in-kernel from lengths (no (T,B,H) mask in HBM).
        valid = t < lengths                        # (block_b, 1) bool

        # pack_padded_sequence semantics: state frozen past the sequence end.
        h = jnp.where(valid, h_new, h)
        c = jnp.where(valid, c_new, c)

        # pad_packed_sequence + masked_fill_(-inf): padded slots hold -inf.
        out_t = jnp.where(valid, h_new, -jnp.inf)
        out_ref[tt] = out_t.astype(out_ref.dtype)
        sent = jnp.maximum(sent, out_t)
        return h, c, sent

    h, c, sent = lax.fori_loop(
        0, Tt, step, (h_ref[...], c_ref[...], sent_ref[...]), unroll=True)
    h_ref[...] = h
    c_ref[...] = c
    sent_ref[...] = sent


def run_lstm_recurrence(xp, w_hh, lengths_col, *, Tt, block_b=None,
                        out_dtype=jnp.float32,
                        vmem_limit_bytes=_DEFAULT_VMEM_LIMIT):
    Tp, B, G = xp.shape
    H = w_hh.shape[0]
    # Optional batch tiling: a "parallel" leading grid axis lets Mosaic shard
    # independent sequences across v7x's two TensorCores (pass block_b=B//2
    # there).  On single-TC v5e/v6e keep block_b=None (nb=1).  Tiles must be
    # a multiple of 8 sublanes (or the full batch).
    if (block_b is None or block_b <= 0 or B % block_b != 0
            or (block_b != B and block_b % 8 != 0)):
        block_b = B
    nb = B // block_b
    n_t = Tp // Tt
    kernel = partial(lstm_recurrence_kernel, Tt=Tt, H=H)
    return pl.pallas_call(
        kernel,
        out_shape=(jax.ShapeDtypeStruct((Tp, B, H), out_dtype),   # LSTM outs
                   jax.ShapeDtypeStruct((B, H), jnp.float32),     # final h
                   jax.ShapeDtypeStruct((B, H), jnp.float32),     # final c
                   jax.ShapeDtypeStruct((B, H), jnp.float32)),    # sentemb
        grid=(nb, n_t),
        in_specs=[pl.BlockSpec((block_b, 1), lambda bi, ti: (bi, 0)),
                  pl.BlockSpec((Tt, block_b, G), lambda bi, ti: (ti, bi, 0)),
                  pl.BlockSpec((H, G), lambda bi, ti: (0, 0))],
        out_specs=(pl.BlockSpec((Tt, block_b, H), lambda bi, ti: (ti, bi, 0)),
                   pl.BlockSpec((block_b, H), lambda bi, ti: (bi, 0)),
                   pl.BlockSpec((block_b, H), lambda bi, ti: (bi, 0)),
                   pl.BlockSpec((block_b, H), lambda bi, ti: (bi, 0))),
        compiler_params=pltpu.CompilerParams(
            dimension_semantics=("parallel", "arbitrary"),
            vmem_limit_bytes=vmem_limit_bytes),
    )(lengths_col, xp, w_hh)


# ---------------------------------------------------------------------------
# JAX glue (fully traced / jittable, no host syncs)
# ---------------------------------------------------------------------------
def convert_padding_direction_left_to_right(src_tokens, padding_idx):
    """Traced port of convert_padding_direction(..., left_to_right=True)."""
    pad_mask = src_tokens == padding_idx
    T = src_tokens.shape[1]
    rng = jnp.arange(T, dtype=src_tokens.dtype)[None, :]
    num_pads = pad_mask.astype(src_tokens.dtype).sum(axis=1, keepdims=True)
    rotated = jnp.remainder(rng + num_pads, T)
    # Apply the rotation only if some row is left-padded (traced select
    # instead of a host-sync Python branch).
    do_convert = jnp.any(pad_mask[:, 0])
    index = jnp.where(do_convert, rotated,
                      jnp.broadcast_to(rng, src_tokens.shape))
    return jnp.take_along_axis(src_tokens, index, axis=1)


@partial(jax.jit,
         static_argnames=("padding_idx", "left_pad", "tt_block", "block_b"))
def encoder_forward(params, src_tokens, src_lengths, padding_idx,
                    left_pad=True, tt_block=8, block_b=None):
    # TODO(synk): only num_layers=1, bidirectional=False is implemented (the
    # module's defaults).
    if left_pad:
        src_tokens = convert_padding_direction_left_to_right(src_tokens,
                                                             padding_idx)
    B, T = src_tokens.shape
    E = params["w_ih"].shape[0]
    G = params["w_ih"].shape[1]
    H = params["w_hh"].shape[0]

    # Embedding lookup stays in XLA (gather), done time-major so the float
    # activations never get relayouted: transpose the tiny int token matrix.
    tokens_tm = src_tokens.T                                   # (T, B)
    x = params["embed"][tokens_tm].astype(jnp.bfloat16)        # (T, B, E)

    # Block Tt timesteps per recurrence grid step; pad time to a multiple.
    Tt = max(1, min(tt_block, T))
    Tp = ((T + Tt - 1) // Tt) * Tt
    if Tp != T:
        x = jnp.pad(x, ((0, Tp - T), (0, 0), (0, 0)))

    w_ih = params["w_ih"].astype(jnp.bfloat16)                 # (E, 4H)
    w_hh = params["w_hh"].astype(jnp.bfloat16)                 # (H, 4H)
    bias = params["bias"].astype(jnp.float32)                  # (1, 4H)

    # Hoisted input projection as one flattened, row-tiled Pallas GEMM.
    x_flat = x.reshape(Tp * B, E)
    xp = run_input_projection(x_flat, w_ih, bias).reshape(Tp, B, G)  # bf16

    # Sequence lengths as a tiny (B,1) int32 array -> in-kernel mask.
    lengths_col = src_lengths.astype(jnp.int32).reshape(B, 1)

    out, h, c, sent = run_lstm_recurrence(xp, w_hh, lengths_col,
                                          Tt=Tt, block_b=block_b)
    out = out[:T]                                              # drop time pad

    final_hiddens = h[None]      # (num_layers=1, B, H)
    final_cells = c[None]

    # Always return the mask; the PyTorch-style "mask or None" choice is a
    # Python-level decision made by the (non-traced) caller.
    enc_pad_mask = jnp.transpose(src_tokens == padding_idx)    # (T, B)

    return {
        "sentemb": sent,
        "encoder_out": (out, final_hiddens, final_cells),
        "encoder_padding_mask": enc_pad_mask,
    }


# ---------------------------------------------------------------------------
if __name__ == "__main__":
    # Small, module-consistent shapes.
    num_embeddings, padding_idx = 50, 1
    embed_dim, hidden_size = 32, 32
    B, T = 4, 10
    G = 4 * hidden_size

    key = jax.random.PRNGKey(0)
    k_emb, k_wih, k_whh, k_b, k_tok = jax.random.split(key, 5)

    embed = 0.1 * jax.random.normal(k_emb, (num_embeddings, embed_dim),
                                    jnp.float32)
    embed = embed.at[padding_idx].set(0.0)   # nn.Embedding(padding_idx=...)
    params = {
        "embed": embed,
        # Fused gate layout, columns ordered (i | f | g | o) like PyTorch rows.
        "w_ih": 0.1 * jax.random.normal(k_wih, (embed_dim, G), jnp.float32),
        "w_hh": 0.1 * jax.random.normal(k_whh, (hidden_size, G), jnp.float32),
        "bias": 0.1 * jax.random.normal(k_b, (1, G), jnp.float32),  # b_ih+b_hh
    }

    # Descending lengths (pack_padded_sequence requires sorted lengths >= 1),
    # tokens LEFT-padded as the module expects (left_pad=True).
    lengths = np.array([10, 7, 5, 3], dtype=np.int32)
    toks = np.asarray(jax.random.randint(k_tok, (B, T), 2, num_embeddings,
                                         jnp.int32))
    src = np.full((B, T), padding_idx, dtype=np.int32)
    for b in range(B):
        L = int(lengths[b])
        src[b, T - L:] = toks[b, :L]
    src_tokens = jnp.asarray(src)
    src_lengths = jnp.asarray(lengths)

    result = encoder_forward(params, src_tokens, src_lengths,
                             padding_idx=padding_idx, left_pad=True,
                             tt_block=4)
    jax.block_until_ready(result["sentemb"])
    jax.block_until_ready(result["encoder_out"])

    # PyTorch-style None-vs-mask selection, host-side (outside the jit core).
    enc_pad_mask = result["encoder_padding_mask"]
    enc_pad_mask = enc_pad_mask if bool(np.asarray(enc_pad_mask).any()) else None

    x_out, fh, fc = result["encoder_out"]
    assert result["sentemb"].shape == (B, hidden_size)
    assert x_out.shape == (T, B, hidden_size)
    assert fh.shape == (1, B, hidden_size) and fc.shape == (1, B, hidden_size)
    assert enc_pad_mask is not None and enc_pad_mask.shape == (T, B)
    assert bool(np.isfinite(np.asarray(result["sentemb"])).all())

    # --- pure-NumPy reference mirroring the PyTorch forward -----------------
    def _sigmoid(v):
        return 1.0 / (1.0 + np.exp(-v))

    def _bf16(a):
        return np.asarray(jnp.asarray(a).astype(jnp.bfloat16)
                          .astype(jnp.float32))

    conv = np.full((B, T), padding_idx, dtype=np.int32)
    for b in range(B):
        L = int(lengths[b])
        conv[b, :L] = src[b, T - L:]                    # left->right conversion
    emb_np = _bf16(params["embed"])[conv]                           # (B,T,E)
    w_ih_np = _bf16(params["w_ih"]); w_hh_np = _bf16(params["w_hh"])
    bias_np = np.asarray(params["bias"])[0]
    H = hidden_size
    h_np = np.zeros((B, H), np.float32); c_np = np.zeros((B, H), np.float32)
    ref_out = np.zeros((T, B, H), np.float32)
    for t in range(T):
        g = emb_np[:, t, :] @ w_ih_np + h_np @ w_hh_np + bias_np
        i_g = _sigmoid(g[:, 0 * H:1 * H]); f_g = _sigmoid(g[:, 1 * H:2 * H])
        g_g = np.tanh(g[:, 2 * H:3 * H]);  o_g = _sigmoid(g[:, 3 * H:4 * H])
        c_new = f_g * c_np + i_g * g_g
        h_new = o_g * np.tanh(c_new)
        valid = (t < lengths)[:, None]
        h_np = np.where(valid, h_new, h_np)
        c_np = np.where(valid, c_new, c_np)
        ref_out[t] = np.where(valid, h_new, -np.inf)
    ref_sent = ref_out.max(axis=0)

    tol = dict(rtol=2e-2, atol=2e-2)
    np.testing.assert_allclose(np.asarray(result["sentemb"]), ref_sent, **tol)
    np.testing.assert_allclose(np.asarray(x_out), ref_out, **tol)
    np.testing.assert_allclose(np.asarray(fh[0]), h_np, **tol)
    np.testing.assert_allclose(np.asarray(fc[0]), c_np, **tol)

    print("KERNEL_OK")
</pallas_src>

<mosaic_0001>
module attributes {stable_mosaic.version = 11 : i64} {
  func.func @input_proj_kernel(%arg0: i32, %arg1: memref<48x32xbf16, #tpu.memory_space<vmem>>, %arg2: memref<32x128xbf16, #tpu.memory_space<vmem>>, %arg3: memref<1x128xf32, #tpu.memory_space<vmem>>, %arg4: memref<48x128xbf16, #tpu.memory_space<vmem>>) attributes {dimension_semantics = [#tpu.dimension_semantics<parallel>], iteration_bounds = array<i64: 1>, scalar_prefetch = 0 : i64, scratch_operands = 0 : i64, tpu.core_type = #tpu.core_type<tc>, window_params = [{transform_indices = @transform_0, window_bounds = array<i64: 48, 32>}, {pipeline_mode = #tpu.pipeline_mode<synchronous>, transform_indices = @transform_1, window_bounds = array<i64: 32, 128>}, {pipeline_mode = #tpu.pipeline_mode<synchronous>, transform_indices = @transform_2, window_bounds = array<i64: 1, 128>}, {transform_indices = @transform_3, window_bounds = array<i64: 48, 128>}]} {
    %c0 = arith.constant 0 : index
    %c0_0 = arith.constant 0 : index
    %0 = vector.load %arg1[%c0, %c0_0] : memref<48x32xbf16, #tpu.memory_space<vmem>>, vector<48x32xbf16>
    %c0_1 = arith.constant 0 : index
    %c0_2 = arith.constant 0 : index
    %1 = vector.load %arg2[%c0_1, %c0_2] : memref<32x128xbf16, #tpu.memory_space<vmem>>, vector<32x128xbf16>
    %cst = arith.constant dense<0.000000e+00> : vector<48x128xf32>
    %2 = tpu.matmul %0, %1, %cst {dimension_numbers = #tpu.dot_dimension_numbers<[1], [0], [0], [1], [0, 0, 1, 1], [], []>} : vector<48x32xbf16>, vector<32x128xbf16>, vector<48x128xf32> -> vector<48x128xf32>
    %c0_3 = arith.constant 0 : index
    %c0_4 = arith.constant 0 : index
    %3 = vector.load %arg3[%c0_3, %c0_4] : memref<1x128xf32, #tpu.memory_space<vmem>>, vector<1x128xf32>
    %4 = vector.broadcast %3 : vector<1x128xf32> to vector<48x128xf32>
    %5 = arith.addf %2, %4 : vector<48x128xf32>
    %6 = arith.truncf %5 : vector<48x128xf32> to vector<48x128xbf16>
    %c0_5 = arith.constant 0 : index
    %c0_6 = arith.constant 0 : index
    %7 = vector.load %arg4[%c0_5, %c0_6] : memref<48x128xbf16, #tpu.memory_space<vmem>>, vector<48x128xbf16>
    tpu.vector_store %arg4[%c0_5, %c0_6], %6 {strides = array<i32>} : memref<48x128xbf16, #tpu.memory_space<vmem>>, vector<48x128xbf16>,
    return
  }
  func.func @transform_0(%arg0: i32) -> (i32, i32) {
    %c0_i32 = arith.constant 0 : i32
    %c0_i32_0 = arith.constant 0 : i32
    return %arg0, %c0_i32 : i32, i32
  }
  func.func @transform_1(%arg0: i32) -> (i32, i32) {
    %c0_i32 = arith.constant 0 : i32
    %c0_i32_0 = arith.constant 0 : i32
    %c0_i32_1 = arith.constant 0 : i32
    return %c0_i32, %c0_i32_0 : i32, i32
  }
  func.func @transform_2(%arg0: i32) -> (i32, i32) {
    %c0_i32 = arith.constant 0 : i32
    %c0_i32_0 = arith.constant 0 : i32
    %c0_i32_1 = arith.constant 0 : i32
    return %c0_i32, %c0_i32_0 : i32, i32
  }
  func.func @transform_3(%arg0: i32) -> (i32, i32) {
    %c0_i32 = arith.constant 0 : i32
    %c0_i32_0 = arith.constant 0 : i32
    return %arg0, %c0_i32 : i32, i32
  }
}

module attributes {stable_mosaic.version = 11 : i64} {
  func.func @lstm_recurrence_kernel(%arg0: i32, %arg1: i32, %arg2: memref<4x1xi32, #tpu.memory_space<vmem>>, %arg3: memref<4x4x128xbf16, #tpu.memory_space<vmem>>, %arg4: memref<32x128xbf16, #tpu.memory_space<vmem>>, %arg5: memref<4x4x32xf32, #tpu.memory_space<vmem>>, %arg6: memref<4x32xf32, #tpu.memory_space<vmem>>, %arg7: memref<4x32xf32, #tpu.memory_space<vmem>>, %arg8: memref<4x32xf32, #tpu.memory_space<vmem>>) attributes {dimension_semantics = [#tpu.dimension_semantics<parallel>, #tpu.dimension_semantics<arbitrary>], iteration_bounds = array<i64: 1, 3>, scalar_prefetch = 0 : i64, scratch_operands = 0 : i64, tpu.core_type = #tpu.core_type<tc>, window_params = [{transform_indices = @transform_0, window_bounds = array<i64: 4, 1>}, {transform_indices = @transform_1, window_bounds = array<i64: 4, 4, 128>}, {pipeline_mode = #tpu.pipeline_mode<synchronous>, transform_indices = @transform_2, window_bounds = array<i64: 32, 128>}, {transform_indices = @transform_3, window_bounds = array<i64: 4, 4, 32>}, {transform_indices = @transform_4, window_bounds = array<i64: 4, 32>}, {transform_indices = @transform_5, window_bounds = array<i64: 4, 32>}, {transform_indices = @transform_6, window_bounds = array<i64: 4, 32>}]} {
    %c0_i32 = arith.constant 0 : i32
    %0 = arith.cmpi eq, %arg1, %c0_i32 : i32
    %1 = arith.extui %0 : i1 to i32
    %c0_i32_0 = arith.constant 0 : i32
    %2 = arith.cmpi ne, %1, %c0_i32_0 : i32
    scf.if %2 {
      %cst_56 = arith.constant 0.000000e+00 : f32
      %215 = vector.broadcast %cst_56 : f32 to vector<4x32xf32>
      %c0_57 = arith.constant 0 : index
      %c0_58 = arith.constant 0 : index
      %216 = vector.load %arg6[%c0_57, %c0_58] : memref<4x32xf32, #tpu.memory_space<vmem>>, vector<4x32xf32>
      tpu.vector_store %arg6[%c0_57, %c0_58], %215 {strides = array<i32>} : memref<4x32xf32, #tpu.memory_space<vmem>>, vector<4x32xf32>,
      %cst_59 = arith.constant 0.000000e+00 : f32
      %217 = vector.broadcast %cst_59 : f32 to vector<4x32xf32>
      %c0_60 = arith.constant 0 : index
      %c0_61 = arith.constant 0 : index
      %218 = vector.load %arg7[%c0_60, %c0_61] : memref<4x32xf32, #tpu.memory_space<vmem>>, vector<4x32xf32>
      tpu.vector_store %arg7[%c0_60, %c0_61], %217 {strides = array<i32>} : memref<4x32xf32, #tpu.memory_space<vmem>>, vector<4x32xf32>,
      %cst_62 = arith.constant 0xFF800000 : f32
      %219 = vector.broadcast %cst_62 : f32 to vector<4x32xf32>
      %c0_63 = arith.constant 0 : index
      %c0_64 = arith.constant 0 : index
      %220 = vector.load %arg8[%c0_63, %c0_64] : memref<4x32xf32, #tpu.memory_space<vmem>>, vector<4x32xf32>
      tpu.vector_store %arg8[%c0_63, %c0_64], %219 {strides = array<i32>} : memref<4x32xf32, #tpu.memory_space<vmem>>, vector<4x32xf32>,
    } else {
    }
    %c0 = arith.constant 0 : index
    %c0_1 = arith.constant 0 : index
    %3 = vector.load %arg2[%c0, %c0_1] : memref<4x1xi32, #tpu.memory_space<vmem>>, vector<4x1xi32>
    %c0_2 = arith.constant 0 : index
    %c0_3 = arith.constant 0 : index
    %4 = vector.load %arg4[%c0_2, %c0_3] : memref<32x128xbf16, #tpu.memory_space<vmem>>, vector<32x128xbf16>
    %c0_4 = arith.constant 0 : index
    %c0_5 = arith.constant 0 : index
    %5 = vector.load %arg6[%c0_4, %c0_5] : memref<4x32xf32, #tpu.memory_space<vmem>>, vector<4x32xf32>
    %c0_6 = arith.constant 0 : index
    %c0_7 = arith.constant 0 : index
    %6 = vector.load %arg7[%c0_6, %c0_7] : memref<4x32xf32, #tpu.memory_space<vmem>>, vector<4x32xf32>
    %c0_8 = arith.constant 0 : index
    %c0_9 = arith.constant 0 : index
    %7 = vector.load %arg8[%c0_8, %c0_9] : memref<4x32xf32, #tpu.memory_space<vmem>>, vector<4x32xf32>
    %c0_i32_10 = arith.constant 0 : i32
    %c4_i32 = arith.constant 4 : i32
    %8 = arith.muli %arg1, %c4_i32 : i32
    %9 = arith.addi %8, %c0_i32_10 : i32
    %10 = arith.index_cast %c0_i32_10 : i32 to index
    %c0_11 = arith.constant 0 : index
    %c0_12 = arith.constant 0 : index
    %11 = vector.load %arg3[%10, %c0_11, %c0_12] : memref<4x4x128xbf16, #tpu.memory_space<vmem>>, vector<1x4x128xbf16>
    %12 = vector.shape_cast %11 : vector<1x4x128xbf16> to vector<4x128xbf16>
    %13 = arith.extf %12 : vector<4x128xbf16> to vector<4x128xf32>
    %14 = arith.truncf %5 : vector<4x32xf32> to vector<4x32xbf16>
    %cst = arith.constant dense<0.000000e+00> : vector<4x128xf32>
    %15 = tpu.matmul %14, %4, %cst {dimension_numbers = #tpu.dot_dimension_numbers<[1], [0], [0], [1], [0, 0, 1, 1], [], []>} : vector<4x32xbf16>, vector<32x128xbf16>, vector<4x128xf32> -> vector<4x128xf32>
    %16 = arith.addf %13, %15 : vector<4x128xf32>
    %17 = vector.extract_strided_slice %16 {offsets = [0, 0], sizes = [4, 32], strides = [1, 1]} : vector<4x128xf32> to vector<4x32xf32>
    %18 = arith.negf %17 : vector<4x32xf32>
    %19 = math.exp %18 : vector<4x32xf32>
    %cst_13 = arith.constant 1.000000e+00 : f32
    %20 = vector.broadcast %cst_13 : f32 to vector<4x32xf32>
    %21 = arith.addf %20, %19 : vector<4x32xf32>
    %22 = arith.divf %20, %21 : vector<4x32xf32>
    %23 = vector.extract_strided_slice %16 {offsets = [0, 32], sizes = [4, 32], strides = [1, 1]} : vector<4x128xf32> to vector<4x32xf32>
    %24 = arith.negf %23 : vector<4x32xf32>
    %25 = math.exp %24 : vector<4x32xf32>
    %cst_14 = arith.constant 1.000000e+00 : f32
    %26 = vector.broadcast %cst_14 : f32 to vector<4x32xf32>
    %27 = arith.addf %26, %25 : vector<4x32xf32>
    %28 = arith.divf %26, %27 : vector<4x32xf32>
    %29 = vector.extract_strided_slice %16 {offsets = [0, 64], sizes = [4, 32], strides = [1, 1]} : vector<4x128xf32> to vector<4x32xf32>
    %30 = math.tanh %29 : vector<4x32xf32>
    %31 = vector.extract_strided_slice %16 {offsets = [0, 96], sizes = [4, 32], strides = [1, 1]} : vector<4x128xf32> to vector<4x32xf32>
    %32 = arith.negf %31 : vector<4x32xf32>
    %33 = math.exp %32 : vector<4x32xf32>
    %cst_15 = arith.constant 1.000000e+00 : f32
    %34 = vector.broadcast %cst_15 : f32 to vector<4x32xf32>
    %35 = arith.addf %34, %33 : vector<4x32xf32>
    %36 = arith.divf %34, %35 : vector<4x32xf32>
    %37 = arith.mulf %28, %6 : vector<4x32xf32>
    %38 = arith.mulf %22, %30 : vector<4x32xf32>
    %39 = arith.addf %37, %38 : vector<4x32xf32>
    %40 = math.tanh %39 : vector<4x32xf32>
    %41 = arith.mulf %36, %40 : vector<4x32xf32>
    %42 = vector.broadcast %9 : i32 to vector<4x1xi32>
    %43 = arith.cmpi slt, %42, %3 : vector<4x1xi32>
    %44 = vector.shape_cast %43 : vector<4x1xi1> to vector<4x1xi1>
    %45 = vector.broadcast %44 : vector<4x1xi1> to vector<4x32xi1>
    %46 = arith.select %45, %41, %5 : vector<4x32xi1>, vector<4x32xf32>
    %47 = vector.shape_cast %43 : vector<4x1xi1> to vector<4x1xi1>
    %48 = vector.broadcast %47 : vector<4x1xi1> to vector<4x32xi1>
    %49 = arith.select %48, %39, %6 : vector<4x32xi1>, vector<4x32xf32>
    %cst_16 = arith.constant 0xFF800000 : f32
    %50 = vector.shape_cast %43 : vector<4x1xi1> to vector<4x1xi1>
    %51 = vector.broadcast %50 : vector<4x1xi1> to vector<4x32xi1>
    %52 = vector.broadcast %cst_16 : f32 to vector<4x32xf32>
    %53 = arith.select %51, %41, %52 : vector<4x32xi1>, vector<4x32xf32>
    %54 = arith.index_cast %c0_i32_10 : i32 to index
    %c0_17 = arith.constant 0 : index
    %c0_18 = arith.constant 0 : index
    %55 = vector.load %arg5[%54, %c0_17, %c0_18] : memref<4x4x32xf32, #tpu.memory_space<vmem>>, vector<1x4x32xf32>
    %56 = vector.shape_cast %55 : vector<1x4x32xf32> to vector<4x32xf32>
    %57 = vector.shape_cast %53 : vector<4x32xf32> to vector<1x4x32xf32>
    tpu.vector_store %arg5[%54, %c0_17, %c0_18], %57 {strides = array<i32>} : memref<4x4x32xf32, #tpu.memory_space<vmem>>, vector<1x4x32xf32>,
    %58 = arith.maximumf %7, %53 : vector<4x32xf32>
    %c1_i32 = arith.constant 1 : i32
    %c4_i32_19 = arith.constant 4 : i32
    %59 = arith.muli %arg1, %c4_i32_19 : i32
    %60 = arith.addi %59, %c1_i32 : i32
    %61 = arith.index_cast %c1_i32 : i32 to index
    %c0_20 = arith.constant 0 : index
    %c0_21 = arith.constant 0 : index
    %62 = vector.load %arg3[%61, %c0_20, %c0_21] : memref<4x4x128xbf16, #tpu.memory_space<vmem>>, vector<1x4x128xbf16>
    %63 = vector.shape_cast %62 : vector<1x4x128xbf16> to vector<4x128xbf16>
    %64 = arith.extf %63 : vector<4x128xbf16> to vector<4x128xf32>
    %65 = arith.truncf %46 : vector<4x32xf32> to vector<4x32xbf16>
    %cst_22 = arith.constant dense<0.000000e+00> : vector<4x128xf32>
    %66 = tpu.matmul %65, %4, %cst_22 {dimension_numbers = #tpu.dot_dimension_numbers<[1], [0], [0], [1], [0, 0, 1, 1], [], []>} : vector<4x32xbf16>, vector<32x128xbf16>, vector<4x128xf32> -> vector<4x128xf32>
    %67 = arith.addf %64, %66 : vector<4x128xf32>
    %68 = vector.extract_strided_slice %67 {offsets = [0, 0], sizes = [4, 32], strides = [1, 1]} : vector<4x128xf32> to vector<4x32xf32>
    %69 = arith.negf %68 : vector<4x32xf32>
    %70 = math.exp %69 : vector<4x32xf32>
    %cst_23 = arith.constant 1.000000e+00 : f32
    %71 = vector.broadcast %cst_23 : f32 to vector<4x32xf32>
    %72 = arith.addf %71, %70 : vector<4x32xf32>
    %73 = arith.divf %71, %72 : vector<4x32xf32>
    %74 = vector.extract_strided_slice %67 {offsets = [0, 32], sizes = [4, 32], strides = [1, 1]} : vector<4x128xf32> to vector<4x32xf32>
    %75 = arith.negf %74 : vector<4x32xf32>
    %76 = math.exp %75 : vector<4x32xf32>
    %cst_24 = arith.constant 1.000000e+00 : f32
    %77 = vector.broadcast %cst_24 : f32 to vector<4x32xf32>
    %78 = arith.addf %77, %76 : vector<4x32xf32>
    %79 = arith.divf %77, %78 : vector<4x32xf32>
    %80 = vector.extract_strided_slice %67 {offsets = [0, 64], sizes = [4, 32], strides = [1, 1]} : vector<4x128xf32> to vector<4x32xf32>
    %81 = math.tanh %80 : vector<4x32xf32>
    %82 = vector.extract_strided_slice %67 {offsets = [0, 96], sizes = [4, 32], strides = [1, 1]} : vector<4x128xf32> to vector<4x32xf32>
    %83 = arith.negf %82 : vector<4x32xf32>
    %84 = math.exp %83 : vector<4x32xf32>
    %cst_25 = arith.constant 1.000000e+00 : f32
    %85 = vector.broadcast %cst_25 : f32 to vector<4x32xf32>
    %86 = arith.addf %85, %84 : vector<4x32xf32>
    %87 = arith.divf %85, %86 : vector<4x32xf32>
    %88 = arith.mulf %79, %49 : vector<4x32xf32>
    %89 = arith.mulf %73, %81 : vector<4x32xf32>
    %90 = arith.addf %88, %89 : vector<4x32xf32>
    %91 = math.tanh %90 : vector<4x32xf32>
    %92 = arith.mulf %87, %91 : vector<4x32xf32>
    %93 = vector.broadcast %60 : i32 to vector<4x1xi32>
    %94 = arith.cmpi slt, %93, %3 : vector<4x1xi32>
    %95 = vector.shape_cast %94 : vector<4x1xi1> to vector<4x1xi1>
    %96 = vector.broadcast %95 : vector<4x1xi1> to vector<4x32xi1>
    %97 = arith.select %96, %92, %46 : vector<4x32xi1>, vector<4x32xf32>
    %98 = vector.shape_cast %94 : vector<4x1xi1> to vector<4x1xi1>
    %99 = vector.broadcast %98 : vector<4x1xi1> to vector<4x32xi1>
    %100 = arith.select %99, %90, %49 : vector<4x32xi1>, vector<4x32xf32>
    %cst_26 = arith.constant 0xFF800000 : f32
    %101 = vector.shape_cast %94 : vector<4x1xi1> to vector<4x1xi1>
    %102 = vector.broadcast %101 : vector<4x1xi1> to vector<4x32xi1>
    %103 = vector.broadcast %cst_26 : f32 to vector<4x32xf32>
    %104 = arith.select %102, %92, %103 : vector<4x32xi1>, vector<4x32xf32>
    %105 = arith.index_cast %c1_i32 : i32 to index
    %c0_27 = arith.constant 0 : index
    %c0_28 = arith.constant 0 : index
    %106 = vector.load %arg5[%105, %c0_27, %c0_28] : memref<4x4x32xf32, #tpu.memory_space<vmem>>, vector<1x4x32xf32>
    %107 = vector.shape_cast %106 : vector<1x4x32xf32> to vector<4x32xf32>
    %108 = vector.shape_cast %104 : vector<4x32xf32> to vector<1x4x32xf32>
    tpu.vector_store %arg5[%105, %c0_27, %c0_28], %108 {strides = array<i32>} : memref<4x4x32xf32, #tpu.memory_space<vmem>>, vector<1x4x32xf32>,
    %109 = arith.maximumf %58, %104 : vector<4x32xf32>
    %c2_i32 = arith.constant 2 : i32
    %c4_i32_29 = arith.constant 4 : i32
    %110 = arith.muli %arg1, %c4_i32_29 : i32
    %111 = arith.addi %110, %c2_i32 : i32
    %112 = arith.index_cast %c2_i32 : i32 to index
    %c0_30 = arith.constant 0 : index
    %c0_31 = arith.constant 0 : index
    %113 = vector.load %arg3[%112, %c0_30, %c0_31] : memref<4x4x128xbf16, #tpu.memory_space<vmem>>, vector<1x4x128xbf16>
    %114 = vector.shape_cast %113 : vector<1x4x128xbf16> to vector<4x128xbf16>
    %115 = arith.extf %114 : vector<4x128xbf16> to vector<4x128xf32>
    %116 = arith.truncf %97 : vector<4x32xf32> to vector<4x32xbf16>
    %cst_32 = arith.constant dense<0.000000e+00> : vector<4x128xf32>
    %117 = tpu.matmul %116, %4, %cst_32 {dimension_numbers = #tpu.dot_dimension_numbers<[1], [0], [0], [1], [0, 0, 1, 1], [], []>} : vector<4x32xbf16>, vector<32x128xbf16>, vector<4x128xf32> -> vector<4x128xf32>
    %118 = arith.addf %115, %117 : vector<4x128xf32>
    %119 = vector.extract_strided_slice %118 {offsets = [0, 0], sizes = [4, 32], strides = [1, 1]} : vector<4x128xf32> to vector<4x32xf32>
    %120 = arith.negf %119 : vector<4x32xf32>
    %121 = math.exp %120 : vector<4x32xf32>
    %cst_33 = arith.constant 1.000000e+00 : f32
    %122 = vector.broadcast %cst_33 : f32 to vector<4x32xf32>
    %123 = arith.addf %122, %121 : vector<4x32xf32>
    %124 = arith.divf %122, %123 : vector<4x32xf32>
    %125 = vector.extract_strided_slice %118 {offsets = [0, 32], sizes = [4, 32], strides = [1, 1]} : vector<4x128xf32> to vector<4x32xf32>
    %126 = arith.negf %125 : vector<4x32xf32>
    %127 = math.exp %126 : vector<4x32xf32>
    %cst_34 = arith.constant 1.000000e+00 : f32
    %128 = vector.broadcast %cst_34 : f32 to vector<4x32xf32>
    %129 = arith.addf %128, %127 : vector<4x32xf32>
    %130 = arith.divf %128, %129 : vector<4x32xf32>
    %131 = vector.extract_strided_slice %118 {offsets = [0, 64], sizes = [4, 32], strides = [1, 1]} : vector<4x128xf32> to vector<4x32xf32>
    %132 = math.tanh %131 : vector<4x32xf32>
    %133 = vector.extract_strided_slice %118 {offsets = [0, 96], sizes = [4, 32], strides = [1, 1]} : vector<4x128xf32> to vector<4x32xf32>
    %134 = arith.negf %133 : vector<4x32xf32>
    %135 = math.exp %134 : vector<4x32xf32>
    %cst_35 = arith.constant 1.000000e+00 : f32
    %136 = vector.broadcast %cst_35 : f32 to vector<4x32xf32>
    %137 = arith.addf %136, %135 : vector<4x32xf32>
    %138 = arith.divf %136, %137 : vector<4x32xf32>
    %139 = arith.mulf %130, %100 : vector<4x32xf32>
    %140 = arith.mulf %124, %132 : vector<4x32xf32>
    %141 = arith.addf %139, %140 : vector<4x32xf32>
    %142 = math.tanh %141 : vector<4x32xf32>
    %143 = arith.mulf %138, %142 : vector<4x32xf32>
    %144 = vector.broadcast %111 : i32 to vector<4x1xi32>
    %145 = arith.cmpi slt, %144, %3 : vector<4x1xi32>
    %146 = vector.shape_cast %145 : vector<4x1xi1> to vector<4x1xi1>
    %147 = vector.broadcast %146 : vector<4x1xi1> to vector<4x32xi1>
    %148 = arith.select %147, %143, %97 : vector<4x32xi1>, vector<4x32xf32>
    %149 = vector.shape_cast %145 : vector<4x1xi1> to vector<4x1xi1>
    %150 = vector.broadcast %149 : vector<4x1xi1> to vector<4x32xi1>
    %151 = arith.select %150, %141, %100 : vector<4x32xi1>, vector<4x32xf32>
    %cst_36 = arith.constant 0xFF800000 : f32
    %152 = vector.shape_cast %145 : vector<4x1xi1> to vector<4x1xi1>
    %153 = vector.broadcast %152 : vector<4x1xi1> to vector<4x32xi1>
    %154 = vector.broadcast %cst_36 : f32 to vector<4x32xf32>
    %155 = arith.select %153, %143, %154 : vector<4x32xi1>, vector<4x32xf32>
    %156 = arith.index_cast %c2_i32 : i32 to index
    %c0_37 = arith.constant 0 : index
    %c0_38 = arith.constant 0 : index
    %157 = vector.load %arg5[%156, %c0_37, %c0_38] : memref<4x4x32xf32, #tpu.memory_space<vmem>>, vector<1x4x32xf32>
    %158 = vector.shape_cast %157 : vector<1x4x32xf32> to vector<4x32xf32>
    %159 = vector.shape_cast %155 : vector<4x32xf32> to vector<1x4x32xf32>
    tpu.vector_store %arg5[%156, %c0_37, %c0_38], %159 {strides = array<i32>} : memref<4x4x32xf32, #tpu.memory_space<vmem>>, vector<1x4x32xf32>,
    %160 = arith.maximumf %109, %155 : vector<4x32xf32>
    %c3_i32 = arith.constant 3 : i32
    %c4_i32_39 = arith.constant 4 : i32
    %161 = arith.muli %arg1, %c4_i32_39 : i32
    %162 = arith.addi %161, %c3_i32 : i32
    %163 = arith.index_cast %c3_i32 : i32 to index
    %c0_40 = arith.constant 0 : index
    %c0_41 = arith.constant 0 : index
    %164 = vector.load %arg3[%163, %c0_40, %c0_41] : memref<4x4x128xbf16, #tpu.memory_space<vmem>>, vector<1x4x128xbf16>
    %165 = vector.shape_cast %164 : vector<1x4x128xbf16> to vector<4x128xbf16>
    %166 = arith.extf %165 : vector<4x128xbf16> to vector<4x128xf32>
    %167 = arith.truncf %148 : vector<4x32xf32> to vector<4x32xbf16>
    %cst_42 = arith.constant dense<0.000000e+00> : vector<4x128xf32>
    %168 = tpu.matmul %167, %4, %cst_42 {dimension_numbers = #tpu.dot_dimension_numbers<[1], [0], [0], [1], [0, 0, 1, 1], [], []>} : vector<4x32xbf16>, vector<32x128xbf16>, vector<4x128xf32> -> vector<4x128xf32>
    %169 = arith.addf %166, %168 : vector<4x128xf32>
    %170 = vector.extract_strided_slice %169 {offsets = [0, 0], sizes = [4, 32], strides = [1, 1]} : vector<4x128xf32> to vector<4x32xf32>
    %171 = arith.negf %170 : vector<4x32xf32>
    %172 = math.exp %171 : vector<4x32xf32>
    %cst_43 = arith.constant 1.000000e+00 : f32
    %173 = vector.broadcast %cst_43 : f32 to vector<4x32xf32>
    %174 = arith.addf %173, %172 : vector<4x32xf32>
    %175 = arith.divf %173, %174 : vector<4x32xf32>
    %176 = vector.extract_strided_slice %169 {offsets = [0, 32], sizes = [4, 32], strides = [1, 1]} : vector<4x128xf32> to vector<4x32xf32>
    %177 = arith.negf %176 : vector<4x32xf32>
    %178 = math.exp %177 : vector<4x32xf32>
    %cst_44 = arith.constant 1.000000e+00 : f32
    %179 = vector.broadcast %cst_44 : f32 to vector<4x32xf32>
    %180 = arith.addf %179, %178 : vector<4x32xf32>
    %181 = arith.divf %179, %180 : vector<4x32xf32>
    %182 = vector.extract_strided_slice %169 {offsets = [0, 64], sizes = [4, 32], strides = [1, 1]} : vector<4x128xf32> to vector<4x32xf32>
    %183 = math.tanh %182 : vector<4x32xf32>
    %184 = vector.extract_strided_slice %169 {offsets = [0, 96], sizes = [4, 32], strides = [1, 1]} : vector<4x128xf32> to vector<4x32xf32>
    %185 = arith.negf %184 : vector<4x32xf32>
    %186 = math.exp %185 : vector<4x32xf32>
    %cst_45 = arith.constant 1.000000e+00 : f32
    %187 = vector.broadcast %cst_45 : f32 to vector<4x32xf32>
    %188 = arith.addf %187, %186 : vector<4x32xf32>
    %189 = arith.divf %187, %188 : vector<4x32xf32>
    %190 = arith.mulf %181, %151 : vector<4x32xf32>
    %191 = arith.mulf %175, %183 : vector<4x32xf32>
    %192 = arith.addf %190, %191 : vector<4x32xf32>
    %193 = math.tanh %192 : vector<4x32xf32>
    %194 = arith.mulf %189, %193 : vector<4x32xf32>
    %195 = vector.broadcast %162 : i32 to vector<4x1xi32>
    %196 = arith.cmpi slt, %195, %3 : vector<4x1xi32>
    %197 = vector.shape_cast %196 : vector<4x1xi1> to vector<4x1xi1>
    %198 = vector.broadcast %197 : vector<4x1xi1> to vector<4x32xi1>
    %199 = arith.select %198, %194, %148 : vector<4x32xi1>, vector<4x32xf32>
    %200 = vector.shape_cast %196 : vector<4x1xi1> to vector<4x1xi1>
    %201 = vector.broadcast %200 : vector<4x1xi1> to vector<4x32xi1>
    %202 = arith.select %201, %192, %151 : vector<4x32xi1>, vector<4x32xf32>
    %cst_46 = arith.constant 0xFF800000 : f32
    %203 = vector.shape_cast %196 : vector<4x1xi1> to vector<4x1xi1>
    %204 = vector.broadcast %203 : vector<4x1xi1> to vector<4x32xi1>
    %205 = vector.broadcast %cst_46 : f32 to vector<4x32xf32>
    %206 = arith.select %204, %194, %205 : vector<4x32xi1>, vector<4x32xf32>
    %207 = arith.index_cast %c3_i32 : i32 to index
    %c0_47 = arith.constant 0 : index
    %c0_48 = arith.constant 0 : index
    %208 = vector.load %arg5[%207, %c0_47, %c0_48] : memref<4x4x32xf32, #tpu.memory_space<vmem>>, vector<1x4x32xf32>
    %209 = vector.shape_cast %208 : vector<1x4x32xf32> to vector<4x32xf32>
    %210 = vector.shape_cast %206 : vector<4x32xf32> to vector<1x4x32xf32>
    tpu.vector_store %arg5[%207, %c0_47, %c0_48], %210 {strides = array<i32>} : memref<4x4x32xf32, #tpu.memory_space<vmem>>, vector<1x4x32xf32>,
    %211 = arith.maximumf %160, %206 : vector<4x32xf32>
    %c4_i32_49 = arith.constant 4 : i32
    %c0_50 = arith.constant 0 : index
    %c0_51 = arith.constant 0 : index
    %212 = vector.load %arg6[%c0_50, %c0_51] : memref<4x32xf32, #tpu.memory_space<vmem>>, vector<4x32xf32>
    tpu.vector_store %arg6[%c0_50, %c0_51], %199 {strides = array<i32>} : memref<4x32xf32, #tpu.memory_space<vmem>>, vector<4x32xf32>,
    %c0_52 = arith.constant 0 : index
    %c0_53 = arith.constant 0 : index
    %213 = vector.load %arg7[%c0_52, %c0_53] : memref<4x32xf32, #tpu.memory_space<vmem>>, vector<4x32xf32>
    tpu.vector_store %arg7[%c0_52, %c0_53], %202 {strides = array<i32>} : memref<4x32xf32, #tpu.memory_space<vmem>>, vector<4x32xf32>,
    %c0_54 = arith.constant 0 : index
    %c0_55 = arith.constant 0 : index
    %214 = vector.load %arg8[%c0_54, %c0_55] : memref<4x32xf32, #tpu.memory_space<vmem>>, vector<4x32xf32>
    tpu.vector_store %arg8[%c0_54, %c0_55], %211 {strides = array<i32>} : memref<4x32xf32, #tpu.memory_space<vmem>>, vector<4x32xf32>,
    return
  }
  func.func @transform_0(%arg0: i32, %arg1: i32) -> (i32, i32) {
    %c0_i32 = arith.constant 0 : i32
    %c0_i32_0 = arith.constant 0 : i32
    return %arg0, %c0_i32 : i32, i32
  }
  func.func @transform_1(%arg0: i32, %arg1: i32) -> (i32, i32, i32) {
    %c0_i32 = arith.constant 0 : i32
    %c0_i32_0 = arith.constant 0 : i32
    return %arg1, %arg0, %c0_i32 : i32, i32, i32
  }
  func.func @transform_2(%arg0: i32, %arg1: i32) -> (i32, i32) {
    %c0_i32 = arith.constant 0 : i32
    %c0_i32_0 = arith.constant 0 : i32
    %c0_i32_1 = arith.constant 0 : i32
    return %c0_i32, %c0_i32_0 : i32, i32
  }
  func.func @transform_3(%arg0: i32, %arg1: i32) -> (i32, i32, i32) {
    %c0_i32 = arith.constant 0 : i32
    %c0_i32_0 = arith.constant 0 : i32
    return %arg1, %arg0, %c0_i32 : i32, i32, i32
  }
  func.func @transform_4(%arg0: i32, %arg1: i32) -> (i32, i32) {
    %c0_i32 = arith.constant 0 : i32
    %c0_i32_0 = arith.constant 0 : i32
    return %arg0, %c0_i32 : i32, i32
  }
  func.func @transform_5(%arg0: i32, %arg1: i32) -> (i32, i32) {
    %c0_i32 = arith.constant 0 : i32
    %c0_i32_0 = arith.constant 0 : i32
    return %arg0, %c0_i32 : i32, i32
  }
  func.func @transform_6(%arg0: i32, %arg1: i32) -> (i32, i32) {
    %c0_i32 = arith.constant 0 : i32
    %c0_i32_0 = arith.constant 0 : i32
    return %arg0, %c0_i32 : i32, i32
  }
}

</mosaic_0001>

<llo_original>
// kernel: encoder_forward.2
$region0: #{encoder_forward.2}
  #allocation0 [shape = 'u32[]', space=smem, size = 0x4, offset = 0x4, fixed_abs, tag = 'smem constant byte address 0x4 - core index']
  #allocation1 [shape = 'u32[72,128]{1,0:T(1,128)}', space=vmem, size = 0x9000, scoped, tag = 'internal scratch']
  %s0 = inlined_call_operand.vmem [shape: bf16[48,32], index: 0, kind: input, shape index: {}]
  %s1 = inlined_call_operand.vmem [shape: bf16[32,128], index: 1, kind: input, shape index: {}]
  %s2 = inlined_call_operand.vmem [shape: f32[1,128], index: 2, kind: input, shape index: {}]
  %s3 = inlined_call_operand.vmem [shape: bf16[48,128], index: 3, kind: output, shape index: {}]
  %s4 = sld [smem:[#allocation0]]
  $region22: #{encoder_forward.2} parent=0
    _
  %s6 = ssub.s32 1, %s4
  %s7 = scalar_select 0, %s6, %s4
  // Predicated region
  $region2: #{encoder_forward.2} parent=0 // pred_check
    _
  $region3: #{encoder_forward.2} parent=0 // pred_check_branch
    %9 = sbr.rel (0) target = $region5
  $region4: #{encoder_forward.2} parent=0 // pred_region
    _
  $region5: #{encoder_forward.2} parent=0 // pred_fallthru
    _
  // Predicated region
  $region6: #{encoder_forward.2} parent=0 // pred_check
    _
  $region7: #{encoder_forward.2} parent=0 // pred_check_branch
    %11 = sbr.rel (0) target = $region9
  $region8: #{encoder_forward.2} parent=0 // pred_region
    _
  $region9: #{encoder_forward.2} parent=0 // pred_fallthru
    _
  // Predicated region
  $region10: #{encoder_forward.2} parent=0 // pred_check
    _
  $region11: #{encoder_forward.2} parent=0 // pred_check_branch
    %13 = sbr.rel (0) target = $region13
  $region12: #{encoder_forward.2} parent=0 // pred_region
    _
  $region13: #{encoder_forward.2} parent=0 // pred_fallthru
    _
  %v15 = vld [vmem:[%s0] sm:$0xf]
  %v16 = vld [vmem:[%s0 + $0x4] sm:$0xf]
  %v17 = vld [vmem:[%s0 + $0x8] sm:$0xf]
  %v18 = vld [vmem:[%s0 + $0xc] sm:$0xf]
  %v19 = vld [vmem:[%s0 + $0x10] sm:$0xf]
  %v20 = vld [vmem:[%s0 + $0x14] sm:$0xf]
  %v21 = vld [vmem:[%s1] sm:$0xf]
  %v22 = vld [vmem:[%s1 + $0x4] sm:$0xf]
  %v23 = vld [vmem:[%s1 + $0x8] sm:$0xf]
  %v24 = vld [vmem:[%s1 + $0xc] sm:$0xf]
  %v25 = vld [vmem:[%s2] sm:$0x1]
  %v27 = vperm.slane %v25, 0
  %v35 = vunpack.c.l.b16 %v15
  %v36 = vunpack.c.l.b16 %v16
  %v37 = vunpack.c.l.b16 %v17
  %v38 = vunpack.c.l.b16 %v18
  %v39 = vunpack.c.l.b16 %v19
  %v40 = vunpack.c.l.b16 %v20
  %v41 = vpack.c.b16 %v36, %v35
  %v42 = vpack.c.b16 %v38, %v37
  %v43 = vpack.c.b16 %v40, %v39
  %v48 = vunpack.c.l.b16 %v21
  %v49 = vunpack.c.l.b16 %v22
  %v50 = vunpack.c.l.b16 %v23
  %v51 = vunpack.c.l.b16 %v24
  %v52 = vpack.c.b16 %v49, %v48
  %v53 = vpack.c.b16 %v51, %v50
  %vm56 = vcmask 261120
  %v58 = vsel %vm56, %v41, 0
  %v61 = vsel %vm56, %v42, 0
  %v64 = vsel %vm56, %v43, 0
  %66 = vmatpush.bf16.msra.mxu0 0
  %67 = vmatpush.bf16.msra.mxu0 0
  %68 = vmatpush.bf16.msra.mxu0 0
  %69 = vmatpush.bf16.msra.mxu0 0
  %70 = vmatpush.bf16.msra.mxu0 0
  %71 = vmatpush.bf16.msra.mxu0 0
  %72 = vmatpush.bf16.msra.mxu0 %v53
  %73 = vmatpush.bf16.msra.mxu0 %v52
  %74 = vmatmul.bf16.gmra.mxu0 %v58
  %v75 = vpop.f32.mrf.mxu0
  %v76 = vadd.f32 %v27, %v75
  %v77 = vpop.f32.mrf.mxu0
  %v78 = vadd.f32 %v27, %v77
  %79 = vmatmul.bf16.gmra.mxu0 %v61
  %v80 = vpop.f32.mrf.mxu0
  %v81 = vadd.f32 %v27, %v80
  %v82 = vpop.f32.mrf.mxu0
  %v83 = vadd.f32 %v27, %v82
  %84 = vmatmul.bf16.gmra.mxu0 %v64
  %v85 = vpop.f32.mrf.mxu0
  %v86 = vadd.f32 %v27, %v85
  %v87 = vpop.f32.mrf.mxu0
  %v88 = vadd.f32 %v27, %v87
  %89 = vdwg.mxu0
  %v90 = vpack.c.bf16 %v76, %v76
  %v91 = vpack.c.bf16 %v78, %v78
  %v92 = vpack.c.bf16 %v81, %v81
  %v93 = vpack.c.bf16 %v83, %v83
  %v94 = vpack.c.bf16 %v86, %v86
  %v95 = vpack.c.bf16 %v88, %v88
  %96 = vst [vmem:[%s3] sm:$0xf] %v90
  %97 = vst [vmem:[%s3 + $0x4] sm:$0xf] %v91
  %98 = vst [vmem:[%s3 + $0x8] sm:$0xf] %v92
  %99 = vst [vmem:[%s3 + $0xc] sm:$0xf] %v93
  %100 = vst [vmem:[%s3 + $0x10] sm:$0xf] %v94
  %101 = vst [vmem:[%s3 + $0x14] sm:$0xf] %v95
  // Predicated region
  $region14: #{encoder_forward.2} parent=0 // pred_check
    _
  $region15: #{encoder_forward.2} parent=0 // pred_check_branch
    %103 = sbr.rel (0) target = $region17
  $region16: #{encoder_forward.2} parent=0 // pred_region
    _
  $region17: #{encoder_forward.2} parent=0 // pred_fallthru
    _
  // Predicated region
  $region18: #{encoder_forward.2} parent=0 // pred_check
    _
  $region19: #{encoder_forward.2} parent=0 // pred_check_branch
    %105 = sbr.rel (0) target = $region21
  $region20: #{encoder_forward.2} parent=0 // pred_region
    _
  $region21: #{encoder_forward.2} parent=0 // pred_fallthru
    _

// kernel: encoder_forward.3
$region0: #{encoder_forward.3}
  #allocation0 [shape = 'u32[]', space=smem, size = 0x4, offset = 0x4, fixed_abs, tag = 'smem constant byte address 0x4 - core index']
  #allocation1 [shape = 'u32[72,128]{1,0:T(1,128)}', space=vmem, size = 0x9000, scoped, tag = 'internal scratch']
  %s0 = inlined_call_operand.vmem [shape: s32[4,1], index: 0, kind: input, shape index: {}]
  %s1 = inlined_call_operand.vmem [shape: bf16[12,4,128], index: 1, kind: input, shape index: {}]
  %s2 = inlined_call_operand.vmem [shape: bf16[32,128], index: 2, kind: input, shape index: {}]
  %s3 = inlined_call_operand.vmem [shape: f32[12,4,32], index: 3, kind: output, shape index: {0}]
  %s4 = inlined_call_operand.hbm [shape: f32[4,32], index: 4, kind: output, shape index: {1}]
  %s5 = inlined_call_operand.hbm [shape: f32[4,32], index: 5, kind: output, shape index: {2}]
  %s6 = inlined_call_operand.hbm [shape: f32[4,32], index: 6, kind: output, shape index: {3}]
  %7 = xla_tuple %s3, %s4, %s5, %s6
  %s8 = sld [smem:[#allocation0]]
  $region73: #{encoder_forward.3} parent=0
    _
  %s10 = ssub.s32 1, %s8
  %s11 = scalar_select 0, %s10, %s8
  $region1: #{encoder_forward.3} parent=0
    #allocation2 [shape = 'u8[2048]{0}', space=vmem, size = 0x800, scoped, tag = 'output window, operand 1, single buffered']
    #allocation3 [shape = 's32[2]{0}', space=sflag, size = 0x8, scoped, tag = 'scoped memory for encoder_forward.3']
    #allocation4 [shape = 'u8[2048]{0}', space=vmem, size = 0x800, scoped, tag = 'output window, operand 2, single buffered']
    #allocation5 [shape = 's32[1]{0}', space=sflag, size = 0x4, scoped, tag = 'scoped memory for encoder_forward.3']
    #allocation6 [shape = 'u8[2048]{0}', space=vmem, size = 0x800, scoped, tag = 'output window, operand 3, single buffered']
    %12 = vsyncpa [#allocation3], 0
    %13 = vsyncpa [#allocation5], 0
    loop: start=0, step=1, limit=5
    $region2: #{encoder_forward.3} parent=1 // loop_pre_header
      _
    $region3: #{encoder_forward.3} parent=1 // loop_header
      %s15 = sphi 0, %s19
      %p16 = scmp.ge.s32.totalorder %s15, 5
      %s22 = sphi 0, %s34
      %s23 = sphi 0, %s30
      %s24 = sphi 0, %s22
      %s25 = sphi 0, %s23
      %s26 = sphi 0, %s24
      %s27 = sphi 0, %s25
      %s37 = sphi 0, %s39
      %s40 = sphi 0, %s37
      %s41 = sphi 0, %s40
      %s57 = sphi 0, %s41
      %s65 = sphi 0, %s67
      %s68 = sphi 0, %s65
      %s69 = sphi 0, %s68
      %s85 = sphi 0, %s69
      %s89 = sphi 0, %s89
      %s91 = sphi 0, %s89
      %s92 = sphi 0, %s91
      %s106 = sphi 0, %s92
      %s114 = sphi 0, %s116
      %s117 = sphi 0, %s114
      %s118 = sphi 0, %s117
      %s134 = sphi 0, %s118
      %s140 = sphi 0, %s142
      %s143 = sphi 0, %s140
      %s144 = sphi 0, %s143
      %s160 = sphi 0, %s144
      %s166 = sphi 0, %s168
      %s169 = sphi 0, %s166
      %s170 = sphi 0, %s169
      %s186 = sphi 0, %s170
      %s192 = sphi 0, %s194
      %s195 = sphi 0, %s192
      %s196 = sphi 0, %s195
      %s212 = sphi 0, %s196
    $region4: #{encoder_forward.3} parent=1 // loop_header_branch
      %18 = sbr.rel (%p16) target = $region8
    $region5: #{encoder_forward.3} parent=1 // loop_body
      %s20 = ssub.s32 %s15, 1
      %s21 = ssub.s32 %s15, 2
      %s28 = sadd.s32 1, %s23
      %p29 = scmp.ge.s32.totalorder %s28, 3
      %s30 = scalar_select %p29, 0, %s28
      %s31 = sadd.s32 1, %s22
      %s32 = scalar_select %p29, %s31, %s22
      %p33 = scmp.ge.s32.totalorder %s32, 1
      %s34 = scalar_select %p33, 0, %s32
      %s35 = ssub.s32 %s22, %s34
      %p36 = scmp.eq.s32.totalorder %s35, 0
      %s38 = sadd.s32 %s37, 1
      %s39 = scalar_select %p36, %s37, %s38
      %p42 = pneg %p36
      %p43 = scmp.eq.s32.totalorder %s15, 2
      %p44 = por %p42, %p43
      %p45 = scmp.ne.s32.totalorder %s37, %s40
      %p46 = scmp.eq.s32.totalorder %s15, 0
      %p47 = por %p45, %p46
      %p48 = scmp.ne.s32.totalorder %s37, %s40
      %p49 = scmp.eq.s32.totalorder %s20, 2
      %p50 = por %p48, %p49
      %p51 = scmp.ne.s32.totalorder %s40, %s41
      %p52 = scmp.eq.s32.totalorder %s20, 0
      %p53 = por %p51, %p52
      %p54 = scmp.ne.s32.totalorder %s40, %s41
      %p55 = scmp.eq.s32.totalorder %s21, 2
      %p56 = por %p54, %p55
      %p58 = scmp.ne.s32.totalorder %s41, %s57
      %p59 = scmp.eq.s32.totalorder %s21, 0
      %p60 = por %p58, %p59
      %s61 = ssub.s32 %s23, %s30
      %s62 = ssub.s32 %s22, %s34
      %s63 = sor.u32 %s61, %s62
      %p64 = scmp.eq.s32.totalorder %s63, 0
      %s66 = sadd.s32 %s65, 1
      %s67 = scalar_select %p64, %s65, %s66
      %p70 = pneg %p64
      %p71 = scmp.eq.s32.totalorder %s15, 2
      %p72 = por %p70, %p71
      %p73 = scmp.ne.s32.totalorder %s65, %s68
      %p74 = scmp.eq.s32.totalorder %s15, 0
      %p75 = por %p73, %p74
      %p76 = scmp.ne.s32.totalorder %s65, %s68
      %p77 = scmp.eq.s32.totalorder %s20, 2
      %p78 = por %p76, %p77
      %p79 = scmp.ne.s32.totalorder %s68, %s69
      %p80 = scmp.eq.s32.totalorder %s20, 0
      %p81 = por %p79, %p80
      %p82 = scmp.ne.s32.totalorder %s68, %s69
      %p83 = scmp.eq.s32.totalorder %s21, 2
      %p84 = por %p82, %p83
      %p86 = scmp.ne.s32.totalorder %s69, %s85
      %p87 = scmp.eq.s32.totalorder %s21, 0
      %p88 = por %p86, %p87
      %s90 = sadd.s32 %s89, 1
      %p93 = scmp.eq.s32.totalorder %s15, 2
      %p94 = scmp.ne.s32.totalorder %s89, %s91
      %p95 = scmp.eq.s32.totalorder %s15, 0
      %p96 = por %p94, %p95
      %p97 = scmp.ne.s32.totalorder %s89, %s91
      %p98 = scmp.eq.s32.totalorder %s20, 2
      %p99 = por %p97, %p98
      %p100 = scmp.ne.s32.totalorder %s91, %s92
      %p101 = scmp.eq.s32.totalorder %s20, 0
      %p102 = por %p100, %p101
      %p103 = scmp.ne.s32.totalorder %s91, %s92
      %p104 = scmp.eq.s32.totalorder %s21, 2
      %p105 = por %p103, %p104
      %p107 = scmp.ne.s32.totalorder %s92, %s106
      %p108 = scmp.eq.s32.totalorder %s21, 0
      %p109 = por %p107, %p108
      %s110 = ssub.s32 %s23, %s30
      %s111 = ssub.s32 %s22, %s34
      %s112 = sor.u32 %s110, %s111
      %p113 = scmp.eq.s32.totalorder %s112, 0
      %s115 = sadd.s32 %s114, 1
      %s116 = scalar_select %p113, %s114, %s115
      %p119 = pneg %p113
      %p120 = scmp.eq.s32.totalorder %s15, 2
      %p121 = por %p119, %p120
      %p122 = scmp.ne.s32.totalorder %s114, %s117
      %p123 = scmp.eq.s32.totalorder %s15, 0
      %p124 = por %p122, %p123
      %p125 = scmp.ne.s32.totalorder %s114, %s117
      %p126 = scmp.eq.s32.totalorder %s20, 2
      %p127 = por %p125, %p126
      %p128 = scmp.ne.s32.totalorder %s117, %s118
      %p129 = scmp.eq.s32.totalorder %s20, 0
      %p130 = por %p128, %p129
      %p131 = scmp.ne.s32.totalorder %s117, %s118
      %p132 = scmp.eq.s32.totalorder %s21, 2
      %p133 = por %p131, %p132
      %p135 = scmp.ne.s32.totalorder %s118, %s134
      %p136 = scmp.eq.s32.totalorder %s21, 0
      %p137 = por %p135, %p136
      %s138 = ssub.s32 %s22, %s34
      %p139 = scmp.eq.s32.totalorder %s138, 0
      %s141 = sadd.s32 %s140, 1
      %s142 = scalar_select %p139, %s140, %s141
      %p145 = pneg %p139
      %p146 = scmp.eq.s32.totalorder %s15, 2
      %p147 = por %p145, %p146
      %p148 = scmp.ne.s32.totalorder %s140, %s143
      %p149 = scmp.eq.s32.totalorder %s15, 0
      %p150 = por %p148, %p149
      %p151 = scmp.ne.s32.totalorder %s140, %s143
      %p152 = scmp.eq.s32.totalorder %s20, 2
      %p153 = por %p151, %p152
      %p154 = scmp.ne.s32.totalorder %s143, %s144
      %p155 = scmp.eq.s32.totalorder %s20, 0
      %p156 = por %p154, %p155
      %p157 = scmp.ne.s32.totalorder %s143, %s144
      %p158 = scmp.eq.s32.totalorder %s21, 2
      %p159 = por %p157, %p158
      %p161 = scmp.ne.s32.totalorder %s144, %s160
      %p162 = scmp.eq.s32.totalorder %s21, 0
      %p163 = por %p161, %p162
      %s164 = ssub.s32 %s22, %s34
      %p165 = scmp.eq.s32.totalorder %s164, 0
      %s167 = sadd.s32 %s166, 1
      %s168 = scalar_select %p165, %s166, %s167
      %p171 = pneg %p165
      %p172 = scmp.eq.s32.totalorder %s15, 2
      %p173 = por %p171, %p172
      %p174 = scmp.ne.s32.totalorder %s166, %s169
      %p175 = scmp.eq.s32.totalorder %s15, 0
      %p176 = por %p174, %p175
      %p177 = scmp.ne.s32.totalorder %s166, %s169
      %p178 = scmp.eq.s32.totalorder %s20, 2
      %p179 = por %p177, %p178
      %p180 = scmp.ne.s32.totalorder %s169, %s170
      %p181 = scmp.eq.s32.totalorder %s20, 0
      %p182 = por %p180, %p181
      %p183 = scmp.ne.s32.totalorder %s169, %s170
      %p184 = scmp.eq.s32.totalorder %s21, 2
      %p185 = por %p183, %p184
      %p187 = scmp.ne.s32.totalorder %s170, %s186
      %p188 = scmp.eq.s32.totalorder %s21, 0
      %p189 = por %p187, %p188
      %s190 = ssub.s32 %s22, %s34
      %p191 = scmp.eq.s32.totalorder %s190, 0
      %s193 = sadd.s32 %s192, 1
      %s194 = scalar_select %p191, %s192, %s193
      %p197 = pneg %p191
      %p198 = scmp.eq.s32.totalorder %s15, 2
      %p199 = por %p197, %p198
      %p200 = scmp.ne.s32.totalorder %s192, %s195
      %p201 = scmp.eq.s32.totalorder %s15, 0
      %p202 = por %p200, %p201
      %p203 = scmp.ne.s32.totalorder %s192, %s195
      %p204 = scmp.eq.s32.totalorder %s20, 2
      %p205 = por %p203, %p204
      %p206 = scmp.ne.s32.totalorder %s195, %s196
      %p207 = scmp.eq.s32.totalorder %s20, 0
      %p208 = por %p206, %p207
      %p209 = scmp.ne.s32.totalorder %s195, %s196
      %p210 = scmp.eq.s32.totalorder %s21, 2
      %p211 = por %p209, %p210
      %p213 = scmp.ne.s32.totalorder %s196, %s212
      %p214 = scmp.eq.s32.totalorder %s21, 0
      %p215 = por %p213, %p214
      %p216 = scmp.le.s32.totalorder 1, %s15
      %p217 = scmp.lt.s32.totalorder %s15, 4
      %p218 = pnand %p216, %p217
      %p219 = pneg %p218
      // Predicated region
      $region9: #{encoder_forward.3} parent=5 // pred_check
        _
      $region10: #{encoder_forward.3} parent=5 // pred_check_branch
        %221 = sbr.rel (%p218) target = $region12
      $region11: #{encoder_forward.3} parent=5 // pred_region
        %s222 = ssub.s32 %s15, 1
        // Predicated region
        $region13: #{encoder_forward.3} parent=11 // pred_check
          %p223 = pneg %p53
        $region14: #{encoder_forward.3} parent=11 // pred_check_branch
          %225 = sbr.rel (%p223) target = $region16
        $region15: #{encoder_forward.3} parent=11 // pred_region
          %p226 = scmp.lt.s32.totalorder %s24, 0
          %s227 = scalar_select %p226, %s24, 0
          %s228 = smul.addr %s227, 4
          %s229 = scalar_lea.vmem %s0, %s228
        $region16: #{encoder_forward.3} parent=11 // pred_fallthru
          _
        // Predicated region
        $region17: #{encoder_forward.3} parent=11 // pred_check
          %p230 = pneg %p102
        $region18: #{encoder_forward.3} parent=11 // pred_check_branch
          %232 = sbr.rel (%p230) target = $region20
        $region19: #{encoder_forward.3} parent=11 // pred_region
          _
        $region20: #{encoder_forward.3} parent=11 // pred_fallthru
          _
      $region12: #{encoder_forward.3} parent=5 // pred_fallthru
        _
      %p233 = scmp.lt.s32.totalorder %s15, 3
      // Predicated region
      $region21: #{encoder_forward.3} parent=5 // pred_check
        %p234 = pneg %p233
      $region22: #{encoder_forward.3} parent=5 // pred_check_branch
        %236 = sbr.rel (%p234) target = $region24
      $region23: #{encoder_forward.3} parent=5 // pred_region
        // Predicated region
        $region25: #{encoder_forward.3} parent=23 // pred_check
          %p237 = pneg %p75
        $region26: #{encoder_forward.3} parent=23 // pred_check_branch
          %239 = sbr.rel (%p237) target = $region28
        $region27: #{encoder_forward.3} parent=23 // pred_region
          %s240 = smul.u32 4, %s23
          %p241 = scmp.lt.s32.totalorder %s240, 11
          %s242 = scalar_select %p241, %s240, 11
          %p243 = scmp.lt.s32.totalorder %s22, 0
          %s244 = scalar_select %p243, %s22, 0
          %s245 = sadd.s32 %s244, %s242
          %s246 = smul.addr %s245, 2
          %s247 = scalar_lea.vmem %s1, %s246
          %s248 = smul.u32 4, %s23
        $region28: #{encoder_forward.3} parent=23 // pred_fallthru
          _
      $region24: #{encoder_forward.3} parent=5 // pred_fallthru
        _
      %p249 = scmp.le.s32.totalorder 1, %s15
      %p250 = scmp.lt.s32.totalorder %s15, 4
      %p251 = pnand %p249, %p250
      %p252 = pneg %p251
      // Predicated region
      $region29: #{encoder_forward.3} parent=5 // pred_check
        _
      $region30: #{encoder_forward.3} parent=5 // pred_check_branch
        %254 = sbr.rel (%p251) target = $region32
      $region31: #{encoder_forward.3} parent=5 // pred_region
        %s255 = ssub.s32 %s15, 1
        %p256 = scmp.lt.s32.totalorder %s24, 0
        %s257 = scalar_select %p256, %s24, 0
        %s258 = smul.addr %s257, 4
        %s259 = scalar_lea.vmem %s0, %s258
        %p260 = pneg %p53
        %p261 = pneg %p50
        %s262 = smul.u32 4, %s25
        %p263 = scmp.lt.s32.totalorder %s262, 11
        %s264 = scalar_select %p263, %s262, 11
        %p265 = scmp.lt.s32.totalorder %s24, 0
        %s266 = scalar_select %p265, %s24, 0
        %s267 = sadd.s32 %s266, %s264
        %s268 = smul.addr %s267, 2
        %s269 = scalar_lea.vmem %s1, %s268
        %p270 = pneg %p81
        %p271 = pneg %p78
        %p272 = pneg %p102
        %p273 = pneg %p99
        %p274 = pneg %p130
        %p275 = pneg %p127
        %s276 = smul.u32 4, %s25
        %p277 = scmp.lt.s32.totalorder %s276, 11
        %s278 = scalar_select %p277, %s276, 11
        %p279 = scmp.lt.s32.totalorder %s24, 0
        %s280 = scalar_select %p279, %s24, 0
        %s281 = sadd.s32 %s280, %s278
        %s282 = smul.addr %s281, 4
        %s283 = scalar_lea.vmem %s3, %s282
        %p284 = pneg %p156
        %p285 = pneg %p153
        %p286 = pneg %p182
        %p287 = pneg %p179
        %p288 = pneg %p208
        %p289 = pneg %p205
        %p290 = scmp.lt.s32.totalorder %s24, 0
        %s291 = scalar_select %p290, %s24, 0
        %s292 = smul.addr %s291, 4
        %s293 = scalar_lea.vmem %s0, %s292
        %s294 = smul.u32 4, %s25
        %p295 = scmp.lt.s32.totalorder %s294, 11
        %s296 = scalar_select %p295, %s294, 11
        %p297 = scmp.lt.s32.totalorder %s24, 0
        %s298 = scalar_select %p297, %s24, 0
        %s299 = sadd.s32 %s298, %s296
        %s300 = smul.addr %s299, 2
        %s301 = scalar_lea.vmem %s1, %s300
        %s302 = smul.u32 4, %s25
        %s303 = smul.u32 4, %s25
        %p304 = scmp.lt.s32.totalorder %s303, 11
        %s305 = scalar_select %p304, %s303, 11
        %p306 = scmp.lt.s32.totalorder %s24, 0
        %s307 = scalar_select %p306, %s24, 0
        %s308 = sadd.s32 %s307, %s305
        %s309 = smul.addr %s308, 4
        %s310 = scalar_lea.vmem %s3, %s309
        %s311 = smul.u32 4, %s25
        %p313 = scmp.eq.s32.totalorder %s25, 0
        // Predicated region
        $region33: #{encoder_forward.3} parent=31 // pred_check
          %p314 = pneg %p313
        $region34: #{encoder_forward.3} parent=31 // pred_check_branch
          %316 = sbr.rel (%p314) target = $region36
        $region35: #{encoder_forward.3} parent=31 // pred_region
          %vm317 = vcmask 257024
          %318 = vst.msk [vmem:[#allocation2] sm:$0xf] %vm317, 0.0
          %319 = vst.msk [vmem:[#allocation4] sm:$0xf] %vm317, 0.0
          %320 = vst.msk [vmem:[#allocation6] sm:$0xf] %vm317, -inf
        $region36: #{encoder_forward.3} parent=31 // pred_fallthru
          _
        %v321 = vld [vmem:[%s293] sm:$0xf]
        %v322 = vld [vmem:[%s2] sm:$0xf]
        %v323 = vld [vmem:[%s2 + $0x4] sm:$0xf]
        %v324 = vld [vmem:[%s2 + $0x8] sm:$0xf]
        %v325 = vld [vmem:[%s2 + $0xc] sm:$0xf]
        %v326 = vld [vmem:[#allocation2] sm:$0xf]
        %v327 = vld [vmem:[#allocation4] sm:$0xf]
        %v328 = vld [vmem:[#allocation6] sm:$0xf]
        %s329 = smul.u32 %s25, 4
        %v330 = vld [vmem:[%s301] sm:$0x3]
        %v331 = vunpack.c.l.bf16 %v330
        %v332 = vpack.c.bf16 %v326, %v326
        %v337 = vunpack.c.l.b16 %v322
        %v338 = vunpack.c.l.b16 %v323
        %v339 = vunpack.c.l.b16 %v324
        %v340 = vunpack.c.l.b16 %v325
        %v341 = vpack.c.b16 %v338, %v337
        %v342 = vpack.c.b16 %v340, %v339
        %vm345 = vcmask 261120
        %v347 = vsel %vm345, %v332, 0
        %349 = vmatpush.bf16.msra.mxu0 0
        %350 = vmatpush.bf16.msra.mxu0 0
        %351 = vmatpush.bf16.msra.mxu0 0
        %352 = vmatpush.bf16.msra.mxu0 0
        %353 = vmatpush.bf16.msra.mxu0 0
        %354 = vmatpush.bf16.msra.mxu0 0
        %355 = vmatpush.bf16.msra.mxu0 %v342
        %356 = vmatpush.bf16.msra.mxu0 %v341
        %357 = vmatmul.bf16.gmra.mxu0 %v347
        %v358 = vpop.f32.mrf.mxu0
        %v359 = vadd.f32 0.0, %v358
        %v360 = vpop.f32.mrf.mxu0
        %361 = vdwg.mxu0
        %v362 = vadd.f32 %v331, %v359
        %v363 = vxor.u32 %v362, 2147483648
        %v364 = vmul.f32 %v363, 1.442695
        %v365 = vpow.pop %v364
        %v366 = vadd.f32 %v365, 1.0
        %v367 = vrcp.pop %v366
        %v368 = vmul.f32 %v366, %v367
        %v369 = vsub.f32 1.0, %v368
        %v370 = vmul.f32 %v367, %v369
        %v371 = vadd.f32 %v367, %v370
        %vm372 = vweird.f32 %v366
        %vm373 = vweird.f32 %v367
        %vm374 = vmor %vm372, %vm373
        %v375 = vsel %vm374, %v367, %v371
        %v376 = vand.u32 2147483647, %v366
        %vm377 = vcmp.eq.f32.partialorder %v376, 8.507059e+37
        %v378 = vand.u32 %v366, 2147483648
        %v379 = vor.u32 1.1754944e-38, %v378
        %v380 = vsel %vm377, %v379, %v375
        %v381 = vmul.f32 1.0, %v380
        %v382 = vtanh.pop %v362
        %384 = vrot.lane.b32.xlu0 %v327, 32
        %v385 = vpop.permute.xlu0 %384
        %v387 = vmul.f32 %v381, %v385
        %389 = vrot.lane.b32.xlu0 %v382, 64
        %v390 = vpop.permute.xlu0 %389
        %v392 = vmul.f32 %v381, %v390
        %394 = vrot.lane.b32.xlu0 %v392, 32
        %v395 = vpop.permute.xlu0 %394
        %v397 = vadd.f32 %v387, %v395
        %v398 = vtanh.pop %v397
        %400 = vrot.lane.b32.xlu0 %v398, 64
        %v401 = vpop.permute.xlu0 %400
        %v403 = vmul.f32 %v381, %v401
        %v404 = vstv %s329
        %vm405 = vcmp.lt.s32.totalorder %v404, %v321
        %v406 = vsel %vm405, 1, 0
        %407 = vset.pattern.permute.xlu0 0
        %408 = vperm.xlu0 %407, %v406
        %v409 = vpop.permute.xlu0 %408
        %vm410 = vcmp.eq.s32.totalorder %v409, 1
        %412 = vst [vmem:[#allocation1] ss:$2 sm:$0xff] %v403
        %v413 = vld.sshfl [vmem:[#allocation1] sm:$0xff pattern:$0x75316420]
        %414 = vrot.lane.b32.xlu0 %v413, 32
        %v415 = vpop.permute.xlu0 %414
        %v417 = vsel %vm410, %v415, %v326
        %419 = vst [vmem:[#allocation1] ss:$2 sm:$0xff] %v397
        %v420 = vld.sshfl [vmem:[#allocation1] sm:$0xff pattern:$0x75316420]
        %421 = vrot.lane.b32.xlu0 %v420, 96
        %v422 = vpop.permute.xlu0 %421
        %v424 = vsel %vm410, %v422, %v327
        %425 = vst [vmem:[#allocation1] ss:$2 sm:$0xff] %v403
        %v426 = vld.sshfl [vmem:[#allocation1] sm:$0xff pattern:$0x75316420]
        %427 = vrot.lane.b32.xlu0 %v426, 32
        %v428 = vpop.permute.xlu0 %427
        %v430 = vsel %vm410, %v428, -inf
        %vm431 = vcmask 257024
        %432 = vst.msk [vmem:[%s310] sm:$0xf] %vm431, %v430
        %v433 = vmax.f32 %v328, %v430
        %s434 = sadd.s32 %s329, 1
        %s435 = scalar_lea.vmem %s301, 2
        %v436 = vld [vmem:[%s435] sm:$0x3]
        %v437 = vunpack.c.l.bf16 %v436
        %v438 = vpack.c.bf16 %v417, %v417
        %v440 = vsel %vm345, %v438, 0
        %442 = vmatpush.bf16.msra.mxu0 0
        %443 = vmatpush.bf16.msra.mxu0 0
        %444 = vmatpush.bf16.msra.mxu0 0
        %445 = vmatpush.bf16.msra.mxu0 0
        %446 = vmatpush.bf16.msra.mxu0 0
        %447 = vmatpush.bf16.msra.mxu0 0
        %448 = vmatpush.bf16.msra.mxu0 %v342
        %449 = vmatpush.bf16.msra.mxu0 %v341
        %450 = vmatmul.bf16.gmra.mxu0 %v440
        %v451 = vpop.f32.mrf.mxu0
        %v452 = vadd.f32 0.0, %v451
        %v453 = vpop.f32.mrf.mxu0
        %454 = vdwg.mxu0
        %v455 = vadd.f32 %v437, %v452
        %v456 = vxor.u32 %v455, 2147483648
        %v457 = vmul.f32 %v456, 1.442695
        %v458 = vpow.pop %v457
        %v459 = vadd.f32 %v458, 1.0
        %v460 = vrcp.pop %v459
        %v461 = vmul.f32 %v459, %v460
        %v462 = vsub.f32 1.0, %v461
        %v463 = vmul.f32 %v460, %v462
        %v464 = vadd.f32 %v460, %v463
        %vm465 = vweird.f32 %v459
        %vm466 = vweird.f32 %v460
        %vm467 = vmor %vm465, %vm466
        %v468 = vsel %vm467, %v460, %v464
        %v469 = vand.u32 2147483647, %v459
        %vm470 = vcmp.eq.f32.partialorder %v469, 8.507059e+37
        %v471 = vand.u32 %v459, 2147483648
        %v472 = vor.u32 1.1754944e-38, %v471
        %v473 = vsel %vm470, %v472, %v468
        %v474 = vmul.f32 1.0, %v473
        %v475 = vtanh.pop %v455
        %477 = vrot.lane.b32.xlu0 %v424, 32
        %v478 = vpop.permute.xlu0 %477
        %v480 = vmul.f32 %v474, %v478
        %482 = vrot.lane.b32.xlu0 %v475, 64
        %v483 = vpop.permute.xlu0 %482
        %v485 = vmul.f32 %v474, %v483
        %487 = vrot.lane.b32.xlu0 %v485, 32
        %v488 = vpop.permute.xlu0 %487
        %v490 = vadd.f32 %v480, %v488
        %v491 = vtanh.pop %v490
        %493 = vrot.lane.b32.xlu0 %v491, 64
        %v494 = vpop.permute.xlu0 %493
        %v496 = vmul.f32 %v474, %v494
        %v497 = vstv %s434
        %vm498 = vcmp.lt.s32.totalorder %v497, %v321
        %v499 = vsel %vm498, 1, 0
        %500 = vset.pattern.permute.xlu0 0
        %501 = vperm.xlu0 %500, %v499
        %v502 = vpop.permute.xlu0 %501
        %vm503 = vcmp.eq.s32.totalorder %v502, 1
        %505 = vst [vmem:[#allocation1] ss:$2 sm:$0xff] %v496
        %v506 = vld.sshfl [vmem:[#allocation1] sm:$0xff pattern:$0x75316420]
        %507 = vrot.lane.b32.xlu0 %v506, 32
        %v508 = vpop.permute.xlu0 %507
        %v510 = vsel %vm503, %v508, %v417
        %512 = vst [vmem:[#allocation1] ss:$2 sm:$0xff] %v490
        %v513 = vld.sshfl [vmem:[#allocation1] sm:$0xff pattern:$0x75316420]
        %514 = vrot.lane.b32.xlu0 %v513, 96
        %v515 = vpop.permute.xlu0 %514
        %v517 = vsel %vm503, %v515, %v424
        %518 = vst [vmem:[#allocation1] ss:$2 sm:$0xff] %v496
        %v519 = vld.sshfl [vmem:[#allocation1] sm:$0xff pattern:$0x75316420]
        %520 = vrot.lane.b32.xlu0 %v519, 32
        %v521 = vpop.permute.xlu0 %520
        %v523 = vsel %vm503, %v521, -inf
        %s524 = scalar_lea.vmem %s310, 4
        %525 = vst.msk [vmem:[%s524] sm:$0xf] %vm431, %v523
        %v526 = vmax.f32 %v433, %v523
        %s527 = sadd.s32 %s329, 2
        %s528 = scalar_lea.vmem %s301, 4
        %v529 = vld [vmem:[%s528] sm:$0x3]
        %v530 = vunpack.c.l.bf16 %v529
        %v531 = vpack.c.bf16 %v510, %v510
        %v533 = vsel %vm345, %v531, 0
        %535 = vmatpush.bf16.msra.mxu0 0
        %536 = vmatpush.bf16.msra.mxu0 0
        %537 = vmatpush.bf16.msra.mxu0 0
        %538 = vmatpush.bf16.msra.mxu0 0
        %539 = vmatpush.bf16.msra.mxu0 0
        %540 = vmatpush.bf16.msra.mxu0 0
        %541 = vmatpush.bf16.msra.mxu0 %v342
        %542 = vmatpush.bf16.msra.mxu0 %v341
        %543 = vmatmul.bf16.gmra.mxu0 %v533
        %v544 = vpop.f32.mrf.mxu0
        %v545 = vadd.f32 0.0, %v544
        %v546 = vpop.f32.mrf.mxu0
        %547 = vdwg.mxu0
        %v548 = vadd.f32 %v530, %v545
        %v549 = vxor.u32 %v548, 2147483648
        %v550 = vmul.f32 %v549, 1.442695
        %v551 = vpow.pop %v550
        %v552 = vadd.f32 %v551, 1.0
        %v553 = vrcp.pop %v552
        %v554 = vmul.f32 %v552, %v553
        %v555 = vsub.f32 1.0, %v554
        %v556 = vmul.f32 %v553, %v555
        %v557 = vadd.f32 %v553, %v556
        %vm558 = vweird.f32 %v552
        %vm559 = vweird.f32 %v553
        %vm560 = vmor %vm558, %vm559
        %v561 = vsel %vm560, %v553, %v557
        %v562 = vand.u32 2147483647, %v552
        %vm563 = vcmp.eq.f32.partialorder %v562, 8.507059e+37
        %v564 = vand.u32 %v552, 2147483648
        %v565 = vor.u32 1.1754944e-38, %v564
        %v566 = vsel %vm563, %v565, %v561
        %v567 = vmul.f32 1.0, %v566
        %v568 = vtanh.pop %v548
        %570 = vrot.lane.b32.xlu0 %v517, 32
        %v571 = vpop.permute.xlu0 %570
        %v573 = vmul.f32 %v567, %v571
        %575 = vrot.lane.b32.xlu0 %v568, 64
        %v576 = vpop.permute.xlu0 %575
        %v578 = vmul.f32 %v567, %v576
        %580 = vrot.lane.b32.xlu0 %v578, 32
        %v581 = vpop.permute.xlu0 %580
        %v583 = vadd.f32 %v573, %v581
        %v584 = vtanh.pop %v583
        %586 = vrot.lane.b32.xlu0 %v584, 64
        %v587 = vpop.permute.xlu0 %586
        %v589 = vmul.f32 %v567, %v587
        %v590 = vstv %s527
        %vm591 = vcmp.lt.s32.totalorder %v590, %v321
        %v592 = vsel %vm591, 1, 0
        %593 = vset.pattern.permute.xlu0 0
        %594 = vperm.xlu0 %593, %v592
        %v595 = vpop.permute.xlu0 %594
        %vm596 = vcmp.eq.s32.totalorder %v595, 1
        %598 = vst [vmem:[#allocation1] ss:$2 sm:$0xff] %v589
        %v599 = vld.sshfl [vmem:[#allocation1] sm:$0xff pattern:$0x75316420]
        %600 = vrot.lane.b32.xlu0 %v599, 32
        %v601 = vpop.permute.xlu0 %600
        %v603 = vsel %vm596, %v601, %v510
        %605 = vst [vmem:[#allocation1] ss:$2 sm:$0xff] %v583
        %v606 = vld.sshfl [vmem:[#allocation1] sm:$0xff pattern:$0x75316420]
        %607 = vrot.lane.b32.xlu0 %v606, 96
        %v608 = vpop.permute.xlu0 %607
        %v610 = vsel %vm596, %v608, %v517
        %611 = vst [vmem:[#allocation1] ss:$2 sm:$0xff] %v589
        %v612 = vld.sshfl [vmem:[#allocation1] sm:$0xff pattern:$0x75316420]
        %613 = vrot.lane.b32.xlu0 %v612, 32
        %v614 = vpop.permute.xlu0 %613
        %v616 = vsel %vm596, %v614, -inf
        %s617 = scalar_lea.vmem %s310, 8
        %618 = vst.msk [vmem:[%s617] sm:$0xf] %vm431, %v616
        %v619 = vmax.f32 %v526, %v616
        %s620 = sadd.s32 %s329, 3
        %s621 = scalar_lea.vmem %s301, 6
        %v622 = vld [vmem:[%s621] sm:$0x3]
        %v623 = vunpack.c.l.bf16 %v622
        %v624 = vpack.c.bf16 %v603, %v603
        %v626 = vsel %vm345, %v624, 0
        %628 = vmatpush.bf16.msra.mxu0 0
        %629 = vmatpush.bf16.msra.mxu0 0
        %630 = vmatpush.bf16.msra.mxu0 0
        %631 = vmatpush.bf16.msra.mxu0 0
        %632 = vmatpush.bf16.msra.mxu0 0
        %633 = vmatpush.bf16.msra.mxu0 0
        %634 = vmatpush.bf16.msra.mxu0 %v342
        %635 = vmatpush.bf16.msra.mxu0 %v341
        %636 = vmatmul.bf16.gmra.mxu0 %v626
        %v637 = vpop.f32.mrf.mxu0
        %v638 = vadd.f32 0.0, %v637
        %v639 = vpop.f32.mrf.mxu0
        %640 = vdwg.mxu0
        %v641 = vadd.f32 %v623, %v638
        %v642 = vxor.u32 %v641, 2147483648
        %v643 = vmul.f32 %v642, 1.442695
        %v644 = vpow.pop %v643
        %v645 = vadd.f32 %v644, 1.0
        %v646 = vrcp.pop %v645
        %v647 = vmul.f32 %v645, %v646
        %v648 = vsub.f32 1.0, %v647
        %v649 = vmul.f32 %v646, %v648
        %v650 = vadd.f32 %v646, %v649
        %vm651 = vweird.f32 %v645
        %vm652 = vweird.f32 %v646
        %vm653 = vmor %vm651, %vm652
        %v654 = vsel %vm653, %v646, %v650
        %v655 = vand.u32 2147483647, %v645
        %vm656 = vcmp.eq.f32.partialorder %v655, 8.507059e+37
        %v657 = vand.u32 %v645, 2147483648
        %v658 = vor.u32 1.1754944e-38, %v657
        %v659 = vsel %vm656, %v658, %v654
        %v660 = vmul.f32 1.0, %v659
        %v661 = vtanh.pop %v641
        %663 = vrot.lane.b32.xlu0 %v610, 32
        %v664 = vpop.permute.xlu0 %663
        %v666 = vmul.f32 %v660, %v664
        %668 = vrot.lane.b32.xlu0 %v661, 64
        %v669 = vpop.permute.xlu0 %668
        %v671 = vmul.f32 %v660, %v669
        %673 = vrot.lane.b32.xlu0 %v671, 32
        %v674 = vpop.permute.xlu0 %673
        %v676 = vadd.f32 %v666, %v674
        %v677 = vtanh.pop %v676
        %679 = vrot.lane.b32.xlu0 %v677, 64
        %v680 = vpop.permute.xlu0 %679
        %v682 = vmul.f32 %v660, %v680
        %v683 = vstv %s620
        %vm684 = vcmp.lt.s32.totalorder %v683, %v321
        %v685 = vsel %vm684, 1, 0
        %686 = vset.pattern.permute.xlu0 0
        %687 = vperm.xlu0 %686, %v685
        %v688 = vpop.permute.xlu0 %687
        %vm689 = vcmp.eq.s32.totalorder %v688, 1
        %691 = vst [vmem:[#allocation1] ss:$2 sm:$0xff] %v682
        %v692 = vld.sshfl [vmem:[#allocation1] sm:$0xff pattern:$0x75316420]
        %693 = vrot.lane.b32.xlu0 %v692, 32
        %v694 = vpop.permute.xlu0 %693
        %v696 = vsel %vm689, %v694, %v603
        %698 = vst [vmem:[#allocation1] ss:$2 sm:$0xff] %v676
        %v699 = vld.sshfl [vmem:[#allocation1] sm:$0xff pattern:$0x75316420]
        %700 = vrot.lane.b32.xlu0 %v699, 96
        %v701 = vpop.permute.xlu0 %700
        %v703 = vsel %vm689, %v701, %v610
        %704 = vst [vmem:[#allocation1] ss:$2 sm:$0xff] %v682
        %v705 = vld.sshfl [vmem:[#allocation1] sm:$0xff pattern:$0x75316420]
        %706 = vrot.lane.b32.xlu0 %v705, 32
        %v707 = vpop.permute.xlu0 %706
        %v709 = vsel %vm689, %v707, -inf
        %s710 = scalar_lea.vmem %s310, 12
        %711 = vst.msk [vmem:[%s710] sm:$0xf] %vm431, %v709
        %v712 = vmax.f32 %v619, %v709
        %713 = vst.msk [vmem:[#allocation2] sm:$0xf] %vm431, %v696
        %714 = vst.msk [vmem:[#allocation4] sm:$0xf] %vm431, %v703
        %715 = vst.msk [vmem:[#allocation6] sm:$0xf] %vm431, %v712
        %s716 = smul.u32 4, %s25
        %p717 = scmp.lt.s32.totalorder %s716, 11
        %s718 = scalar_select %p717, %s716, 11
        %p719 = scmp.lt.s32.totalorder %s24, 0
        %s720 = scalar_select %p719, %s24, 0
        %s721 = sadd.s32 %s720, %s718
        %s722 = smul.addr %s721, 4
        %s723 = scalar_lea.vmem %s3, %s722
        // Predicated region
        $region37: #{encoder_forward.3} parent=31 // pred_check
          %p724 = pneg %p127
        $region38: #{encoder_forward.3} parent=31 // pred_check_branch
          %726 = sbr.rel (%p724) target = $region40
        $region39: #{encoder_forward.3} parent=31 // pred_region
          %s727 = smul.u32 4, %s25
        $region40: #{encoder_forward.3} parent=31 // pred_fallthru
          _
        // Predicated region
        $region41: #{encoder_forward.3} parent=31 // pred_check
          %p728 = pneg %p153
        $region42: #{encoder_forward.3} parent=31 // pred_check_branch
          %730 = sbr.rel (%p728) target = $region44
        $region43: #{encoder_forward.3} parent=31 // pred_region
          %732 = vsyncadd [#allocation3], 0
          %s733 = smul.addr %s24, 4
          %s734 = scalar_lea.hbm %s4, %s733
          %s736 = sshll.u32 [#allocation2], 4
          %s737 = int_to_ptr.vmem [resolvable:$true] %s736
          %s738 = sshll.u32 %s734, 4
          %s739 = int_to_ptr.hbm [resolvable:$true] %s738
          %741 = dma.vmem_to_hbm [thread:$0]  %s737, 64, %s739, [#allocation3]
        $region44: #{encoder_forward.3} parent=31 // pred_fallthru
          _
        // Predicated region
        $region45: #{encoder_forward.3} parent=31 // pred_check
          %p742 = pneg %p179
        $region46: #{encoder_forward.3} parent=31 // pred_check_branch
          %744 = sbr.rel (%p742) target = $region48
        $region47: #{encoder_forward.3} parent=31 // pred_region
          %746 = vsyncadd [#allocation5], 0
          %s747 = smul.addr %s24, 4
          %s748 = scalar_lea.hbm %s5, %s747
          %s750 = sshll.u32 [#allocation4], 4
          %s751 = int_to_ptr.vmem [resolvable:$true] %s750
          %s752 = sshll.u32 %s748, 4
          %s753 = int_to_ptr.hbm [resolvable:$true] %s752
          %755 = dma.vmem_to_hbm [thread:$0]  %s751, 64, %s753, [#allocation5]
        $region48: #{encoder_forward.3} parent=31 // pred_fallthru
          _
        // Predicated region
        $region49: #{encoder_forward.3} parent=31 // pred_check
          %p756 = pneg %p205
        $region50: #{encoder_forward.3} parent=31 // pred_check_branch
          %758 = sbr.rel (%p756) target = $region52
        $region51: #{encoder_forward.3} parent=31 // pred_region
          %760 = vsyncadd [#allocation5], 0
          %s761 = smul.addr %s24, 4
          %s762 = scalar_lea.hbm %s6, %s761
          %s764 = sshll.u32 [#allocation6], 4
          %s765 = int_to_ptr.vmem [resolvable:$true] %s764
          %s766 = sshll.u32 %s762, 4
          %s767 = int_to_ptr.hbm [resolvable:$true] %s766
          %769 = dma.vmem_to_hbm [thread:$0]  %s765, 64, %s767, [#allocation5]
        $region52: #{encoder_forward.3} parent=31 // pred_fallthru
          _
        // Predicated region
        $region53: #{encoder_forward.3} parent=31 // pred_check
          %p770 = pneg %p153
        $region54: #{encoder_forward.3} parent=31 // pred_check_branch
          %772 = sbr.rel (%p770) target = $region56
        $region55: #{encoder_forward.3} parent=31 // pred_region
          %774 = dma.done [#allocation3], 64
        $region56: #{encoder_forward.3} parent=31 // pred_fallthru
          _
        // Predicated region
        $region57: #{encoder_forward.3} parent=31 // pred_check
          %p775 = pneg %p179
        $region58: #{encoder_forward.3} parent=31 // pred_check_branch
          %777 = sbr.rel (%p775) target = $region60
        $region59: #{encoder_forward.3} parent=31 // pred_region
          %779 = dma.done [#allocation5], 64
        $region60: #{encoder_forward.3} parent=31 // pred_fallthru
          _
        // Predicated region
        $region61: #{encoder_forward.3} parent=31 // pred_check
          %p780 = pneg %p205
        $region62: #{encoder_forward.3} parent=31 // pred_check_branch
          %782 = sbr.rel (%p780) target = $region64
        $region63: #{encoder_forward.3} parent=31 // pred_region
          %784 = dma.done [#allocation5], 64
        $region64: #{encoder_forward.3} parent=31 // pred_fallthru
          _
      $region32: #{encoder_forward.3} parent=5 // pred_fallthru
        _
      %p785 = scmp.le.s32.totalorder 2, %s15
      // Predicated region
      $region65: #{encoder_forward.3} parent=5 // pred_check
        %p786 = pneg %p785
      $region66: #{encoder_forward.3} parent=5 // pred_check_branch
        %788 = sbr.rel (%p786) target = $region68
      $region67: #{encoder_forward.3} parent=5 // pred_region
        %s789 = ssub.s32 %s15, 2
        // Predicated region
        $region69: #{encoder_forward.3} parent=67 // pred_check
          %p790 = pneg %p133
        $region70: #{encoder_forward.3} parent=67 // pred_check_branch
          %792 = sbr.rel (%p790) target = $region72
        $region71: #{encoder_forward.3} parent=67 // pred_region
          %s793 = smul.u32 4, %s27
          %p794 = scmp.lt.s32.totalorder %s793, 11
          %s795 = scalar_select %p794, %s793, 11
          %p796 = scmp.lt.s32.totalorder %s26, 0
          %s797 = scalar_select %p796, %s26, 0
          %s798 = sadd.s32 %s797, %s795
          %s799 = smul.addr %s798, 4
          %s800 = scalar_lea.vmem %s3, %s799
        $region72: #{encoder_forward.3} parent=67 // pred_fallthru
          _
      $region68: #{encoder_forward.3} parent=5 // pred_fallthru
        _
    $region6: #{encoder_forward.3} parent=1 // loop_footer
      %s19 = sadd.s32 1, %s15
    $region7: #{encoder_forward.3} parent=1 // loop_footer_branch
      %14 = sbr.rel target = $region3
    $region8: #{encoder_forward.3} parent=1 // loop_exit
      _
    %801 = vsyncpa [#allocation3], 1
    %s802 = scalar_lea.sflag [#allocation3], 1
    %803 = vsyncpa %s802, 1
    %804 = vsyncpa [#allocation5], 1

</llo_original>
